<compile_context>
chip_gen: v7x
topology: tpu7x:2x2x1
jax: 0.10.0
libtpu: 0.0.40
codegen_flags: <defaults>
</compile_context>

<pallas_src>
import numpy as np
import jax
import jax.numpy as jnp
from jax import lax
from jax.experimental import pallas as pl
from jax.experimental.pallas import tpu as pltpu


def _bilinear_matrix(out_size, in_size):
    """Interpolation matrix matching F.interpolate(mode='bilinear', align_corners=False)."""
    o = np.arange(out_size, dtype=np.float64)
    src = (o + 0.5) * (in_size / out_size) - 0.5
    src = np.clip(src, 0.0, in_size - 1)
    i0 = np.floor(src).astype(np.int64)
    i1 = np.minimum(i0 + 1, in_size - 1)
    frac = src - i0
    m = np.zeros((out_size, in_size), np.float64)
    np.add.at(m, (np.arange(out_size), i0), 1.0 - frac)
    np.add.at(m, (np.arange(out_size), i1), frac)
    return m.astype(np.float32)


def _shifted_interp_stacks(H, W, Hi, Wi):
    """Per-tap shifted, transposed bilinear matrices with the 3x3 conv's zero
    padding folded in:  AshT[k, h, y] = A[y+k-1, h] (0 when y+k-1 out of range);
    likewise BshT[k, w, x] = B[x+k-1, w]."""
    A = _bilinear_matrix(H, Hi)     # (H, Hi)
    B = _bilinear_matrix(W, Wi)     # (W, Wi)
    AshT = np.zeros((3, Hi, H), np.float32)
    BshT = np.zeros((3, Wi, W), np.float32)
    for k in range(3):
        lo, hi = max(0, 1 - k), min(H, H + 1 - k)
        AshT[k, :, lo:hi] = A[lo + k - 1:hi + k - 1, :].T
        lo, hi = max(0, 1 - k), min(W, W + 1 - k)
        BshT[k, :, lo:hi] = B[lo + k - 1:hi + k - 1, :].T
    return AshT, BshT


def _make_fusion_kernel(channels, HW):
    ns = len(channels)
    ch_off = [0]
    for c in channels:
        ch_off.append(ch_off[-1] + c)

    def kernel(*refs):
        feat_refs = refs[0:ns]                 # (1, nb, Ci, Hi*Wi) VMEM blocks
        m_refs = refs[ns:2 * ns]               # (Hi*Wi, H*W) fused resize+conv mats
        w1_ref, b1_ref, bf_ref = refs[2 * ns:2 * ns + 3]   # SMEM scalar params
        o_ref = refs[2 * ns + 3]               # (1, nb, H*W)

        nb = o_ref.shape[1]
        # final-conv bias folded into the (lane dense) accumulator init.
        acc = jnp.full((nb, HW), bf_ref[0, 0], dtype=jnp.float32)

        for i in range(ns):
            fv = feat_refs[i][0]               # (nb, Ci, Li)
            ci = fv.shape[1]

            # --- 1x1 conv (Ci -> 1): scalar-weight MACs on the VPU, with 4
            # --- independent partial accumulators to break the serial chain.
            nacc = min(4, ci)
            parts = [None] * nacc
            for c in range(ci):
                t = w1_ref[0, ch_off[i] + c] * fv[:, c, :]
                j = c % nacc
                parts[j] = t if parts[j] is None else parts[j] + t
            s = parts[0]
            for p in parts[1:]:
                s = s + p
            s = s + b1_ref[0, i]

            # sigmoid: exp rides the EUP, approx reciprocal also rides the EUP.
            s = pl.reciprocal(1.0 + jnp.exp(-s), approx=True)

            # --- bilinear resize + this scale's 3x3-conv taps: ONE MXU matmul.
            acc = acc + jnp.dot(s, m_refs[i][...],
                                preferred_element_type=jnp.float32)

        o_ref[0] = pl.reciprocal(1.0 + jnp.exp(-acc), approx=True)

    return kernel


def _pick_batch_block(N, max_nb=8):
    """Largest divisor of N that is <= max_nb while leaving >= 2 grid steps
    (keeps both v7x TensorCores busy); falls back to 1."""
    best = 1
    for nb in range(1, min(N, max_nb) + 1):
        if N % nb == 0 and (N // nb >= 2 or N == 1):
            best = nb
    return best


def fusion_head_forward(feats, w1_list, b1, wf, bf):
    """Fusion_head forward.

    feats:   list of (N, Ci, Hi, Wi) float32 arrays (NCHW).
    w1_list: list of (Ci,) arrays       == Conv2d(Ci, 1, 1).weight[0, :, 0, 0]
    b1:      (num_scales,) array        == stacked Conv2d(Ci, 1, 1).bias[0]
    wf:      (num_scales, 3, 3) array   == Conv2d(5, 1, 3, padding=1).weight[0]
    bf:      scalar                     == Conv2d(5, 1, 3, padding=1).bias[0]
    Returns  (N, 1, H, W) with H, W = feats[0].shape[2:].
    """
    ns = len(feats)
    feats = [jnp.asarray(f, jnp.float32) for f in feats]
    N, _, H, W = feats[0].shape
    HW = H * W
    channels = tuple(int(f.shape[1]) for f in feats)
    spatial = [(int(f.shape[2]), int(f.shape[3])) for f in feats]
    wf = jnp.asarray(wf, jnp.float32)

    # Per-scale fused "resize + 3x3-conv taps" matrices.  The bilinear part is
    # a numpy constant; the traced conv weights wf are folded in with one tiny
    # einsum outside the kernel.
    fused_mats = []
    for i, (Hi, Wi) in enumerate(spatial):
        AshT, BshT = _shifted_interp_stacks(H, W, Hi, Wi)
        m = jnp.einsum("ab,ahy,bwx->hwyx", wf[i], AshT, BshT)
        fused_mats.append(m.reshape(Hi * Wi, HW))

    # Batch blocking: nb images per grid step, grid kept >= 2 when possible.
    nb = _pick_batch_block(N)
    G = N // nb
    feats_flat = [f.reshape(G, nb, c, hi * wi)
                  for f, c, (hi, wi) in zip(feats, channels, spatial)]

    # Scalar parameters live in SMEM.
    w1_all = jnp.concatenate(
        [jnp.asarray(w, jnp.float32).reshape(-1) for w in w1_list]).reshape(1, -1)
    b1_all = jnp.asarray(b1, jnp.float32).reshape(1, ns)
    bf_arr = jnp.asarray(bf, jnp.float32).reshape(1, 1)

    smem_spec = pl.BlockSpec(memory_space=pltpu.MemorySpace.SMEM)
    in_specs = (
        [pl.BlockSpec((1, nb) + tuple(f.shape[2:]), lambda n: (n, 0, 0, 0))
         for f in feats_flat]
        + [pl.BlockSpec(tuple(m.shape), lambda n: (0, 0)) for m in fused_mats]
        + [smem_spec, smem_spec, smem_spec]
    )

    # VMEM budget: double-buffered feat blocks + grid-constant fused matrices
    # + output block, with 2x headroom; raises v5e's 16 MiB default scoped
    # limit when needed, capped safely below v7x's 64 MiB physical VMEM.
    need = 0
    for f in feats_flat:
        need += 2 * nb * int(np.prod(f.shape[2:])) * 4
    for m in fused_mats:
        need += 2 * int(np.prod(m.shape)) * 4
    need += 2 * nb * HW * 4
    vmem_limit = int(min(max(2 * need, 32 * 1024 * 1024), 56 * 1024 * 1024))

    out = pl.pallas_call(
        _make_fusion_kernel(channels, HW),
        out_shape=jax.ShapeDtypeStruct((G, nb, HW), jnp.float32),
        grid=(G,),
        in_specs=in_specs,
        out_specs=pl.BlockSpec((1, nb, HW), lambda n: (n, 0, 0)),
        compiler_params=pltpu.CompilerParams(
            dimension_semantics=("parallel",),
            vmem_limit_bytes=vmem_limit),
    )(*feats_flat, *fused_mats, w1_all, b1_all, bf_arr)

    return out.reshape(N, 1, H, W)


if __name__ == "__main__":
    key = jax.random.PRNGKey(0)
    N = 2
    H = W = 16
    channels = (4, 4, 8, 8, 16)     # len == 5 -> matches Conv2d(5, 1, 3) in `final`
    sizes = (16, 16, 8, 8, 4)       # feats[0] defines the output resolution

    keys = jax.random.split(key, 2 * len(channels) + 3)
    feats, w1_list = [], []
    for i, (c, s) in enumerate(zip(channels, sizes)):
        feats.append(jax.random.normal(keys[2 * i], (N, c, s, s), jnp.float32))
        w1_list.append(jax.random.normal(keys[2 * i + 1], (c,), jnp.float32) * 0.5)
    b1 = jax.random.normal(keys[-3], (len(channels),), jnp.float32) * 0.1
    wf = jax.random.normal(keys[-2], (len(channels), 3, 3), jnp.float32) * 0.2
    bf = jax.random.normal(keys[-1], (), jnp.float32) * 0.1

    out = fusion_head_forward(feats, w1_list, b1, wf, bf)
    jax.block_until_ready(out)

    # ---- independent reference: einsum + jax.image.resize (bilinear, half-pixel,
    # equal to PyTorch align_corners=False for upsampling) + lax conv ----
    resized = []
    for i in range(len(channels)):
        y = jnp.einsum("nchw,c->nhw", feats[i], w1_list[i]) + b1[i]
        y = jax.nn.sigmoid(y)
        y = jax.image.resize(y, (N, H, W), method="bilinear")
        resized.append(y)
    cat = jnp.stack(resized, axis=1)                              # (N, 5, H, W)
    ref = lax.conv_general_dilated(
        cat, wf[None], window_strides=(1, 1), padding=[(1, 1), (1, 1)],
        dimension_numbers=("NCHW", "OIHW", "NCHW"))[:, 0] + bf
    ref = jax.nn.sigmoid(ref)

    assert out.shape == (N, 1, H, W)
    max_err = float(jnp.max(jnp.abs(out[:, 0] - ref)))
    assert jnp.allclose(out[:, 0], ref, atol=2e-3, rtol=2e-3), max_err
    print("KERNEL_OK")
</pallas_src>

<mosaic_0001>
module attributes {stable_mosaic.version = 11 : i64} {
  func.func @kernel(%arg0: i32, %arg1: memref<1x1x4x256xf32, #tpu.memory_space<vmem>>, %arg2: memref<1x1x4x256xf32, #tpu.memory_space<vmem>>, %arg3: memref<1x1x8x64xf32, #tpu.memory_space<vmem>>, %arg4: memref<1x1x8x64xf32, #tpu.memory_space<vmem>>, %arg5: memref<1x1x16x16xf32, #tpu.memory_space<vmem>>, %arg6: memref<256x256xf32, #tpu.memory_space<vmem>>, %arg7: memref<256x256xf32, #tpu.memory_space<vmem>>, %arg8: memref<64x256xf32, #tpu.memory_space<vmem>>, %arg9: memref<64x256xf32, #tpu.memory_space<vmem>>, %arg10: memref<16x256xf32, #tpu.memory_space<vmem>>, %arg11: memref<1x40xf32, #tpu.memory_space<smem>>, %arg12: memref<1x5xf32, #tpu.memory_space<smem>>, %arg13: memref<1x1xf32, #tpu.memory_space<smem>>, %arg14: memref<1x1x256xf32, #tpu.memory_space<vmem>>) attributes {dimension_semantics = [#tpu.dimension_semantics<parallel>], iteration_bounds = array<i64: 2>, scalar_prefetch = 0 : i64, scratch_operands = 0 : i64, tpu.core_type = #tpu.core_type<tc>, window_params = [{transform_indices = @transform_0, window_bounds = array<i64: 1, 1, 4, 256>}, {transform_indices = @transform_1, window_bounds = array<i64: 1, 1, 4, 256>}, {transform_indices = @transform_2, window_bounds = array<i64: 1, 1, 8, 64>}, {transform_indices = @transform_3, window_bounds = array<i64: 1, 1, 8, 64>}, {transform_indices = @transform_4, window_bounds = array<i64: 1, 1, 16, 16>}, {pipeline_mode = #tpu.pipeline_mode<synchronous>, transform_indices = @transform_5, window_bounds = array<i64: 256, 256>}, {pipeline_mode = #tpu.pipeline_mode<synchronous>, transform_indices = @transform_6, window_bounds = array<i64: 256, 256>}, {pipeline_mode = #tpu.pipeline_mode<synchronous>, transform_indices = @transform_7, window_bounds = array<i64: 64, 256>}, {pipeline_mode = #tpu.pipeline_mode<synchronous>, transform_indices = @transform_8, window_bounds = array<i64: 64, 256>}, {pipeline_mode = #tpu.pipeline_mode<synchronous>, transform_indices = @transform_9, window_bounds = array<i64: 16, 256>}, {transform_indices = @transform_10, window_bounds = array<i64: 1, 40>}, {transform_indices = @transform_11, window_bounds = array<i64: 1, 5>}, {transform_indices = @transform_12, window_bounds = array<i64: 1, 1>}, {transform_indices = @transform_13, window_bounds = array<i64: 1, 1, 256>}]} {
    %c0 = arith.constant 0 : index
    %c0_0 = arith.constant 0 : index
    %0 = memref.load %arg13[%c0, %c0_0] : memref<1x1xf32, #tpu.memory_space<smem>>
    %1 = vector.broadcast %0 : f32 to vector<1x256xf32>
    %c0_1 = arith.constant 0 : index
    %c0_2 = arith.constant 0 : index
    %c0_3 = arith.constant 0 : index
    %c0_4 = arith.constant 0 : index
    %2 = vector.load %arg1[%c0_1, %c0_2, %c0_3, %c0_4] : memref<1x1x4x256xf32, #tpu.memory_space<vmem>>, vector<1x1x4x256xf32>
    %3 = vector.shape_cast %2 : vector<1x1x4x256xf32> to vector<1x4x256xf32>
    %c0_5 = arith.constant 0 : index
    %c0_6 = arith.constant 0 : index
    %4 = memref.load %arg11[%c0_5, %c0_6] : memref<1x40xf32, #tpu.memory_space<smem>>
    %5 = vector.extract_strided_slice %3 {offsets = [0, 0, 0], sizes = [1, 1, 256], strides = [1, 1, 1]} : vector<1x4x256xf32> to vector<1x1x256xf32>
    %6 = vector.shape_cast %5 : vector<1x1x256xf32> to vector<1x256xf32>
    %7 = vector.broadcast %4 : f32 to vector<1x256xf32>
    %8 = arith.mulf %7, %6 : vector<1x256xf32>
    %c0_7 = arith.constant 0 : index
    %c1 = arith.constant 1 : index
    %9 = memref.load %arg11[%c0_7, %c1] : memref<1x40xf32, #tpu.memory_space<smem>>
    %10 = vector.extract_strided_slice %3 {offsets = [0, 1, 0], sizes = [1, 1, 256], strides = [1, 1, 1]} : vector<1x4x256xf32> to vector<1x1x256xf32>
    %11 = vector.shape_cast %10 : vector<1x1x256xf32> to vector<1x256xf32>
    %12 = vector.broadcast %9 : f32 to vector<1x256xf32>
    %13 = arith.mulf %12, %11 : vector<1x256xf32>
    %c0_8 = arith.constant 0 : index
    %c2 = arith.constant 2 : index
    %14 = memref.load %arg11[%c0_8, %c2] : memref<1x40xf32, #tpu.memory_space<smem>>
    %15 = vector.extract_strided_slice %3 {offsets = [0, 2, 0], sizes = [1, 1, 256], strides = [1, 1, 1]} : vector<1x4x256xf32> to vector<1x1x256xf32>
    %16 = vector.shape_cast %15 : vector<1x1x256xf32> to vector<1x256xf32>
    %17 = vector.broadcast %14 : f32 to vector<1x256xf32>
    %18 = arith.mulf %17, %16 : vector<1x256xf32>
    %c0_9 = arith.constant 0 : index
    %c3 = arith.constant 3 : index
    %19 = memref.load %arg11[%c0_9, %c3] : memref<1x40xf32, #tpu.memory_space<smem>>
    %20 = vector.extract_strided_slice %3 {offsets = [0, 3, 0], sizes = [1, 1, 256], strides = [1, 1, 1]} : vector<1x4x256xf32> to vector<1x1x256xf32>
    %21 = vector.shape_cast %20 : vector<1x1x256xf32> to vector<1x256xf32>
    %22 = vector.broadcast %19 : f32 to vector<1x256xf32>
    %23 = arith.mulf %22, %21 : vector<1x256xf32>
    %24 = arith.addf %8, %13 : vector<1x256xf32>
    %25 = arith.addf %24, %18 : vector<1x256xf32>
    %26 = arith.addf %25, %23 : vector<1x256xf32>
    %c0_10 = arith.constant 0 : index
    %c0_11 = arith.constant 0 : index
    %27 = memref.load %arg12[%c0_10, %c0_11] : memref<1x5xf32, #tpu.memory_space<smem>>
    %28 = vector.broadcast %27 : f32 to vector<1x256xf32>
    %29 = arith.addf %26, %28 : vector<1x256xf32>
    %cst = arith.constant 0.000000e+00 : f32
    %30 = vector.broadcast %cst : f32 to vector<1x256xf32>
    %31 = arith.subf %30, %29 : vector<1x256xf32>
    %32 = math.exp %31 : vector<1x256xf32>
    %cst_12 = arith.constant 1.000000e+00 : f32
    %33 = vector.broadcast %cst_12 : f32 to vector<1x256xf32>
    %34 = arith.addf %33, %32 : vector<1x256xf32>
    %35 = tpu.reciprocal %34 {approx = true} : vector<1x256xf32> -> vector<1x256xf32>
    %c0_13 = arith.constant 0 : index
    %c0_14 = arith.constant 0 : index
    %36 = vector.load %arg6[%c0_13, %c0_14] : memref<256x256xf32, #tpu.memory_space<vmem>>, vector<256x256xf32>
    %cst_15 = arith.constant dense<0.000000e+00> : vector<1x256xf32>
    %37 = tpu.matmul %35, %36, %cst_15 {dimension_numbers = #tpu.dot_dimension_numbers<[1], [0], [0], [1], [0, 0, 1, 1], [], []>} : vector<1x256xf32>, vector<256x256xf32>, vector<1x256xf32> -> vector<1x256xf32>
    %38 = arith.addf %1, %37 : vector<1x256xf32>
    %c0_16 = arith.constant 0 : index
    %c0_17 = arith.constant 0 : index
    %c0_18 = arith.constant 0 : index
    %c0_19 = arith.constant 0 : index
    %39 = vector.load %arg2[%c0_16, %c0_17, %c0_18, %c0_19] : memref<1x1x4x256xf32, #tpu.memory_space<vmem>>, vector<1x1x4x256xf32>
    %40 = vector.shape_cast %39 : vector<1x1x4x256xf32> to vector<1x4x256xf32>
    %c0_20 = arith.constant 0 : index
    %c4 = arith.constant 4 : index
    %41 = memref.load %arg11[%c0_20, %c4] : memref<1x40xf32, #tpu.memory_space<smem>>
    %42 = vector.extract_strided_slice %40 {offsets = [0, 0, 0], sizes = [1, 1, 256], strides = [1, 1, 1]} : vector<1x4x256xf32> to vector<1x1x256xf32>
    %43 = vector.shape_cast %42 : vector<1x1x256xf32> to vector<1x256xf32>
    %44 = vector.broadcast %41 : f32 to vector<1x256xf32>
    %45 = arith.mulf %44, %43 : vector<1x256xf32>
    %c0_21 = arith.constant 0 : index
    %c5 = arith.constant 5 : index
    %46 = memref.load %arg11[%c0_21, %c5] : memref<1x40xf32, #tpu.memory_space<smem>>
    %47 = vector.extract_strided_slice %40 {offsets = [0, 1, 0], sizes = [1, 1, 256], strides = [1, 1, 1]} : vector<1x4x256xf32> to vector<1x1x256xf32>
    %48 = vector.shape_cast %47 : vector<1x1x256xf32> to vector<1x256xf32>
    %49 = vector.broadcast %46 : f32 to vector<1x256xf32>
    %50 = arith.mulf %49, %48 : vector<1x256xf32>
    %c0_22 = arith.constant 0 : index
    %c6 = arith.constant 6 : index
    %51 = memref.load %arg11[%c0_22, %c6] : memref<1x40xf32, #tpu.memory_space<smem>>
    %52 = vector.extract_strided_slice %40 {offsets = [0, 2, 0], sizes = [1, 1, 256], strides = [1, 1, 1]} : vector<1x4x256xf32> to vector<1x1x256xf32>
    %53 = vector.shape_cast %52 : vector<1x1x256xf32> to vector<1x256xf32>
    %54 = vector.broadcast %51 : f32 to vector<1x256xf32>
    %55 = arith.mulf %54, %53 : vector<1x256xf32>
    %c0_23 = arith.constant 0 : index
    %c7 = arith.constant 7 : index
    %56 = memref.load %arg11[%c0_23, %c7] : memref<1x40xf32, #tpu.memory_space<smem>>
    %57 = vector.extract_strided_slice %40 {offsets = [0, 3, 0], sizes = [1, 1, 256], strides = [1, 1, 1]} : vector<1x4x256xf32> to vector<1x1x256xf32>
    %58 = vector.shape_cast %57 : vector<1x1x256xf32> to vector<1x256xf32>
    %59 = vector.broadcast %56 : f32 to vector<1x256xf32>
    %60 = arith.mulf %59, %58 : vector<1x256xf32>
    %61 = arith.addf %45, %50 : vector<1x256xf32>
    %62 = arith.addf %61, %55 : vector<1x256xf32>
    %63 = arith.addf %62, %60 : vector<1x256xf32>
    %c0_24 = arith.constant 0 : index
    %c1_25 = arith.constant 1 : index
    %64 = memref.load %arg12[%c0_24, %c1_25] : memref<1x5xf32, #tpu.memory_space<smem>>
    %65 = vector.broadcast %64 : f32 to vector<1x256xf32>
    %66 = arith.addf %63, %65 : vector<1x256xf32>
    %cst_26 = arith.constant 0.000000e+00 : f32
    %67 = vector.broadcast %cst_26 : f32 to vector<1x256xf32>
    %68 = arith.subf %67, %66 : vector<1x256xf32>
    %69 = math.exp %68 : vector<1x256xf32>
    %cst_27 = arith.constant 1.000000e+00 : f32
    %70 = vector.broadcast %cst_27 : f32 to vector<1x256xf32>
    %71 = arith.addf %70, %69 : vector<1x256xf32>
    %72 = tpu.reciprocal %71 {approx = true} : vector<1x256xf32> -> vector<1x256xf32>
    %c0_28 = arith.constant 0 : index
    %c0_29 = arith.constant 0 : index
    %73 = vector.load %arg7[%c0_28, %c0_29] : memref<256x256xf32, #tpu.memory_space<vmem>>, vector<256x256xf32>
    %cst_30 = arith.constant dense<0.000000e+00> : vector<1x256xf32>
    %74 = tpu.matmul %72, %73, %cst_30 {dimension_numbers = #tpu.dot_dimension_numbers<[1], [0], [0], [1], [0, 0, 1, 1], [], []>} : vector<1x256xf32>, vector<256x256xf32>, vector<1x256xf32> -> vector<1x256xf32>
    %75 = arith.addf %38, %74 : vector<1x256xf32>
    %c0_31 = arith.constant 0 : index
    %c0_32 = arith.constant 0 : index
    %c0_33 = arith.constant 0 : index
    %c0_34 = arith.constant 0 : index
    %76 = vector.load %arg3[%c0_31, %c0_32, %c0_33, %c0_34] : memref<1x1x8x64xf32, #tpu.memory_space<vmem>>, vector<1x1x8x64xf32>
    %77 = vector.shape_cast %76 : vector<1x1x8x64xf32> to vector<1x8x64xf32>
    %c0_35 = arith.constant 0 : index
    %c8 = arith.constant 8 : index
    %78 = memref.load %arg11[%c0_35, %c8] : memref<1x40xf32, #tpu.memory_space<smem>>
    %79 = vector.extract_strided_slice %77 {offsets = [0, 0, 0], sizes = [1, 1, 64], strides = [1, 1, 1]} : vector<1x8x64xf32> to vector<1x1x64xf32>
    %80 = vector.shape_cast %79 : vector<1x1x64xf32> to vector<1x64xf32>
    %81 = vector.broadcast %78 : f32 to vector<1x64xf32>
    %82 = arith.mulf %81, %80 : vector<1x64xf32>
    %c0_36 = arith.constant 0 : index
    %c9 = arith.constant 9 : index
    %83 = memref.load %arg11[%c0_36, %c9] : memref<1x40xf32, #tpu.memory_space<smem>>
    %84 = vector.extract_strided_slice %77 {offsets = [0, 1, 0], sizes = [1, 1, 64], strides = [1, 1, 1]} : vector<1x8x64xf32> to vector<1x1x64xf32>
    %85 = vector.shape_cast %84 : vector<1x1x64xf32> to vector<1x64xf32>
    %86 = vector.broadcast %83 : f32 to vector<1x64xf32>
    %87 = arith.mulf %86, %85 : vector<1x64xf32>
    %c0_37 = arith.constant 0 : index
    %c10 = arith.constant 10 : index
    %88 = memref.load %arg11[%c0_37, %c10] : memref<1x40xf32, #tpu.memory_space<smem>>
    %89 = vector.extract_strided_slice %77 {offsets = [0, 2, 0], sizes = [1, 1, 64], strides = [1, 1, 1]} : vector<1x8x64xf32> to vector<1x1x64xf32>
    %90 = vector.shape_cast %89 : vector<1x1x64xf32> to vector<1x64xf32>
    %91 = vector.broadcast %88 : f32 to vector<1x64xf32>
    %92 = arith.mulf %91, %90 : vector<1x64xf32>
    %c0_38 = arith.constant 0 : index
    %c11 = arith.constant 11 : index
    %93 = memref.load %arg11[%c0_38, %c11] : memref<1x40xf32, #tpu.memory_space<smem>>
    %94 = vector.extract_strided_slice %77 {offsets = [0, 3, 0], sizes = [1, 1, 64], strides = [1, 1, 1]} : vector<1x8x64xf32> to vector<1x1x64xf32>
    %95 = vector.shape_cast %94 : vector<1x1x64xf32> to vector<1x64xf32>
    %96 = vector.broadcast %93 : f32 to vector<1x64xf32>
    %97 = arith.mulf %96, %95 : vector<1x64xf32>
    %c0_39 = arith.constant 0 : index
    %c12 = arith.constant 12 : index
    %98 = memref.load %arg11[%c0_39, %c12] : memref<1x40xf32, #tpu.memory_space<smem>>
    %99 = vector.extract_strided_slice %77 {offsets = [0, 4, 0], sizes = [1, 1, 64], strides = [1, 1, 1]} : vector<1x8x64xf32> to vector<1x1x64xf32>
    %100 = vector.shape_cast %99 : vector<1x1x64xf32> to vector<1x64xf32>
    %101 = vector.broadcast %98 : f32 to vector<1x64xf32>
    %102 = arith.mulf %101, %100 : vector<1x64xf32>
    %103 = arith.addf %82, %102 : vector<1x64xf32>
    %c0_40 = arith.constant 0 : index
    %c13 = arith.constant 13 : index
    %104 = memref.load %arg11[%c0_40, %c13] : memref<1x40xf32, #tpu.memory_space<smem>>
    %105 = vector.extract_strided_slice %77 {offsets = [0, 5, 0], sizes = [1, 1, 64], strides = [1, 1, 1]} : vector<1x8x64xf32> to vector<1x1x64xf32>
    %106 = vector.shape_cast %105 : vector<1x1x64xf32> to vector<1x64xf32>
    %107 = vector.broadcast %104 : f32 to vector<1x64xf32>
    %108 = arith.mulf %107, %106 : vector<1x64xf32>
    %109 = arith.addf %87, %108 : vector<1x64xf32>
    %c0_41 = arith.constant 0 : index
    %c14 = arith.constant 14 : index
    %110 = memref.load %arg11[%c0_41, %c14] : memref<1x40xf32, #tpu.memory_space<smem>>
    %111 = vector.extract_strided_slice %77 {offsets = [0, 6, 0], sizes = [1, 1, 64], strides = [1, 1, 1]} : vector<1x8x64xf32> to vector<1x1x64xf32>
    %112 = vector.shape_cast %111 : vector<1x1x64xf32> to vector<1x64xf32>
    %113 = vector.broadcast %110 : f32 to vector<1x64xf32>
    %114 = arith.mulf %113, %112 : vector<1x64xf32>
    %115 = arith.addf %92, %114 : vector<1x64xf32>
    %c0_42 = arith.constant 0 : index
    %c15 = arith.constant 15 : index
    %116 = memref.load %arg11[%c0_42, %c15] : memref<1x40xf32, #tpu.memory_space<smem>>
    %117 = vector.extract_strided_slice %77 {offsets = [0, 7, 0], sizes = [1, 1, 64], strides = [1, 1, 1]} : vector<1x8x64xf32> to vector<1x1x64xf32>
    %118 = vector.shape_cast %117 : vector<1x1x64xf32> to vector<1x64xf32>
    %119 = vector.broadcast %116 : f32 to vector<1x64xf32>
    %120 = arith.mulf %119, %118 : vector<1x64xf32>
    %121 = arith.addf %97, %120 : vector<1x64xf32>
    %122 = arith.addf %103, %109 : vector<1x64xf32>
    %123 = arith.addf %122, %115 : vector<1x64xf32>
    %124 = arith.addf %123, %121 : vector<1x64xf32>
    %c0_43 = arith.constant 0 : index
    %c2_44 = arith.constant 2 : index
    %125 = memref.load %arg12[%c0_43, %c2_44] : memref<1x5xf32, #tpu.memory_space<smem>>
    %126 = vector.broadcast %125 : f32 to vector<1x64xf32>
    %127 = arith.addf %124, %126 : vector<1x64xf32>
    %cst_45 = arith.constant 0.000000e+00 : f32
    %128 = vector.broadcast %cst_45 : f32 to vector<1x64xf32>
    %129 = arith.subf %128, %127 : vector<1x64xf32>
    %130 = math.exp %129 : vector<1x64xf32>
    %cst_46 = arith.constant 1.000000e+00 : f32
    %131 = vector.broadcast %cst_46 : f32 to vector<1x64xf32>
    %132 = arith.addf %131, %130 : vector<1x64xf32>
    %133 = tpu.reciprocal %132 {approx = true} : vector<1x64xf32> -> vector<1x64xf32>
    %c0_47 = arith.constant 0 : index
    %c0_48 = arith.constant 0 : index
    %134 = vector.load %arg8[%c0_47, %c0_48] : memref<64x256xf32, #tpu.memory_space<vmem>>, vector<64x256xf32>
    %cst_49 = arith.constant dense<0.000000e+00> : vector<1x256xf32>
    %135 = tpu.matmul %133, %134, %cst_49 {dimension_numbers = #tpu.dot_dimension_numbers<[1], [0], [0], [1], [0, 0, 1, 1], [], []>} : vector<1x64xf32>, vector<64x256xf32>, vector<1x256xf32> -> vector<1x256xf32>
    %136 = arith.addf %75, %135 : vector<1x256xf32>
    %c0_50 = arith.constant 0 : index
    %c0_51 = arith.constant 0 : index
    %c0_52 = arith.constant 0 : index
    %c0_53 = arith.constant 0 : index
    %137 = vector.load %arg4[%c0_50, %c0_51, %c0_52, %c0_53] : memref<1x1x8x64xf32, #tpu.memory_space<vmem>>, vector<1x1x8x64xf32>
    %138 = vector.shape_cast %137 : vector<1x1x8x64xf32> to vector<1x8x64xf32>
    %c0_54 = arith.constant 0 : index
    %c16 = arith.constant 16 : index
    %139 = memref.load %arg11[%c0_54, %c16] : memref<1x40xf32, #tpu.memory_space<smem>>
    %140 = vector.extract_strided_slice %138 {offsets = [0, 0, 0], sizes = [1, 1, 64], strides = [1, 1, 1]} : vector<1x8x64xf32> to vector<1x1x64xf32>
    %141 = vector.shape_cast %140 : vector<1x1x64xf32> to vector<1x64xf32>
    %142 = vector.broadcast %139 : f32 to vector<1x64xf32>
    %143 = arith.mulf %142, %141 : vector<1x64xf32>
    %c0_55 = arith.constant 0 : index
    %c17 = arith.constant 17 : index
    %144 = memref.load %arg11[%c0_55, %c17] : memref<1x40xf32, #tpu.memory_space<smem>>
    %145 = vector.extract_strided_slice %138 {offsets = [0, 1, 0], sizes = [1, 1, 64], strides = [1, 1, 1]} : vector<1x8x64xf32> to vector<1x1x64xf32>
    %146 = vector.shape_cast %145 : vector<1x1x64xf32> to vector<1x64xf32>
    %147 = vector.broadcast %144 : f32 to vector<1x64xf32>
    %148 = arith.mulf %147, %146 : vector<1x64xf32>
    %c0_56 = arith.constant 0 : index
    %c18 = arith.constant 18 : index
    %149 = memref.load %arg11[%c0_56, %c18] : memref<1x40xf32, #tpu.memory_space<smem>>
    %150 = vector.extract_strided_slice %138 {offsets = [0, 2, 0], sizes = [1, 1, 64], strides = [1, 1, 1]} : vector<1x8x64xf32> to vector<1x1x64xf32>
    %151 = vector.shape_cast %150 : vector<1x1x64xf32> to vector<1x64xf32>
    %152 = vector.broadcast %149 : f32 to vector<1x64xf32>
    %153 = arith.mulf %152, %151 : vector<1x64xf32>
    %c0_57 = arith.constant 0 : index
    %c19 = arith.constant 19 : index
    %154 = memref.load %arg11[%c0_57, %c19] : memref<1x40xf32, #tpu.memory_space<smem>>
    %155 = vector.extract_strided_slice %138 {offsets = [0, 3, 0], sizes = [1, 1, 64], strides = [1, 1, 1]} : vector<1x8x64xf32> to vector<1x1x64xf32>
    %156 = vector.shape_cast %155 : vector<1x1x64xf32> to vector<1x64xf32>
    %157 = vector.broadcast %154 : f32 to vector<1x64xf32>
    %158 = arith.mulf %157, %156 : vector<1x64xf32>
    %c0_58 = arith.constant 0 : index
    %c20 = arith.constant 20 : index
    %159 = memref.load %arg11[%c0_58, %c20] : memref<1x40xf32, #tpu.memory_space<smem>>
    %160 = vector.extract_strided_slice %138 {offsets = [0, 4, 0], sizes = [1, 1, 64], strides = [1, 1, 1]} : vector<1x8x64xf32> to vector<1x1x64xf32>
    %161 = vector.shape_cast %160 : vector<1x1x64xf32> to vector<1x64xf32>
    %162 = vector.broadcast %159 : f32 to vector<1x64xf32>
    %163 = arith.mulf %162, %161 : vector<1x64xf32>
    %164 = arith.addf %143, %163 : vector<1x64xf32>
    %c0_59 = arith.constant 0 : index
    %c21 = arith.constant 21 : index
    %165 = memref.load %arg11[%c0_59, %c21] : memref<1x40xf32, #tpu.memory_space<smem>>
    %166 = vector.extract_strided_slice %138 {offsets = [0, 5, 0], sizes = [1, 1, 64], strides = [1, 1, 1]} : vector<1x8x64xf32> to vector<1x1x64xf32>
    %167 = vector.shape_cast %166 : vector<1x1x64xf32> to vector<1x64xf32>
    %168 = vector.broadcast %165 : f32 to vector<1x64xf32>
    %169 = arith.mulf %168, %167 : vector<1x64xf32>
    %170 = arith.addf %148, %169 : vector<1x64xf32>
    %c0_60 = arith.constant 0 : index
    %c22 = arith.constant 22 : index
    %171 = memref.load %arg11[%c0_60, %c22] : memref<1x40xf32, #tpu.memory_space<smem>>
    %172 = vector.extract_strided_slice %138 {offsets = [0, 6, 0], sizes = [1, 1, 64], strides = [1, 1, 1]} : vector<1x8x64xf32> to vector<1x1x64xf32>
    %173 = vector.shape_cast %172 : vector<1x1x64xf32> to vector<1x64xf32>
    %174 = vector.broadcast %171 : f32 to vector<1x64xf32>
    %175 = arith.mulf %174, %173 : vector<1x64xf32>
    %176 = arith.addf %153, %175 : vector<1x64xf32>
    %c0_61 = arith.constant 0 : index
    %c23 = arith.constant 23 : index
    %177 = memref.load %arg11[%c0_61, %c23] : memref<1x40xf32, #tpu.memory_space<smem>>
    %178 = vector.extract_strided_slice %138 {offsets = [0, 7, 0], sizes = [1, 1, 64], strides = [1, 1, 1]} : vector<1x8x64xf32> to vector<1x1x64xf32>
    %179 = vector.shape_cast %178 : vector<1x1x64xf32> to vector<1x64xf32>
    %180 = vector.broadcast %177 : f32 to vector<1x64xf32>
    %181 = arith.mulf %180, %179 : vector<1x64xf32>
    %182 = arith.addf %158, %181 : vector<1x64xf32>
    %183 = arith.addf %164, %170 : vector<1x64xf32>
    %184 = arith.addf %183, %176 : vector<1x64xf32>
    %185 = arith.addf %184, %182 : vector<1x64xf32>
    %c0_62 = arith.constant 0 : index
    %c3_63 = arith.constant 3 : index
    %186 = memref.load %arg12[%c0_62, %c3_63] : memref<1x5xf32, #tpu.memory_space<smem>>
    %187 = vector.broadcast %186 : f32 to vector<1x64xf32>
    %188 = arith.addf %185, %187 : vector<1x64xf32>
    %cst_64 = arith.constant 0.000000e+00 : f32
    %189 = vector.broadcast %cst_64 : f32 to vector<1x64xf32>
    %190 = arith.subf %189, %188 : vector<1x64xf32>
    %191 = math.exp %190 : vector<1x64xf32>
    %cst_65 = arith.constant 1.000000e+00 : f32
    %192 = vector.broadcast %cst_65 : f32 to vector<1x64xf32>
    %193 = arith.addf %192, %191 : vector<1x64xf32>
    %194 = tpu.reciprocal %193 {approx = true} : vector<1x64xf32> -> vector<1x64xf32>
    %c0_66 = arith.constant 0 : index
    %c0_67 = arith.constant 0 : index
    %195 = vector.load %arg9[%c0_66, %c0_67] : memref<64x256xf32, #tpu.memory_space<vmem>>, vector<64x256xf32>
    %cst_68 = arith.constant dense<0.000000e+00> : vector<1x256xf32>
    %196 = tpu.matmul %194, %195, %cst_68 {dimension_numbers = #tpu.dot_dimension_numbers<[1], [0], [0], [1], [0, 0, 1, 1], [], []>} : vector<1x64xf32>, vector<64x256xf32>, vector<1x256xf32> -> vector<1x256xf32>
    %197 = arith.addf %136, %196 : vector<1x256xf32>
    %c0_69 = arith.constant 0 : index
    %c0_70 = arith.constant 0 : index
    %c0_71 = arith.constant 0 : index
    %c0_72 = arith.constant 0 : index
    %198 = vector.load %arg5[%c0_69, %c0_70, %c0_71, %c0_72] : memref<1x1x16x16xf32, #tpu.memory_space<vmem>>, vector<1x1x16x16xf32>
    %199 = vector.shape_cast %198 : vector<1x1x16x16xf32> to vector<1x16x16xf32>
    %c0_73 = arith.constant 0 : index
    %c24 = arith.constant 24 : index
    %200 = memref.load %arg11[%c0_73, %c24] : memref<1x40xf32, #tpu.memory_space<smem>>
    %201 = vector.extract_strided_slice %199 {offsets = [0, 0, 0], sizes = [1, 1, 16], strides = [1, 1, 1]} : vector<1x16x16xf32> to vector<1x1x16xf32>
    %202 = vector.shape_cast %201 : vector<1x1x16xf32> to vector<1x16xf32>
    %203 = vector.broadcast %200 : f32 to vector<1x16xf32>
    %204 = arith.mulf %203, %202 : vector<1x16xf32>
    %c0_74 = arith.constant 0 : index
    %c25 = arith.constant 25 : index
    %205 = memref.load %arg11[%c0_74, %c25] : memref<1x40xf32, #tpu.memory_space<smem>>
    %206 = vector.extract_strided_slice %199 {offsets = [0, 1, 0], sizes = [1, 1, 16], strides = [1, 1, 1]} : vector<1x16x16xf32> to vector<1x1x16xf32>
    %207 = vector.shape_cast %206 : vector<1x1x16xf32> to vector<1x16xf32>
    %208 = vector.broadcast %205 : f32 to vector<1x16xf32>
    %209 = arith.mulf %208, %207 : vector<1x16xf32>
    %c0_75 = arith.constant 0 : index
    %c26 = arith.constant 26 : index
    %210 = memref.load %arg11[%c0_75, %c26] : memref<1x40xf32, #tpu.memory_space<smem>>
    %211 = vector.extract_strided_slice %199 {offsets = [0, 2, 0], sizes = [1, 1, 16], strides = [1, 1, 1]} : vector<1x16x16xf32> to vector<1x1x16xf32>
    %212 = vector.shape_cast %211 : vector<1x1x16xf32> to vector<1x16xf32>
    %213 = vector.broadcast %210 : f32 to vector<1x16xf32>
    %214 = arith.mulf %213, %212 : vector<1x16xf32>
    %c0_76 = arith.constant 0 : index
    %c27 = arith.constant 27 : index
    %215 = memref.load %arg11[%c0_76, %c27] : memref<1x40xf32, #tpu.memory_space<smem>>
    %216 = vector.extract_strided_slice %199 {offsets = [0, 3, 0], sizes = [1, 1, 16], strides = [1, 1, 1]} : vector<1x16x16xf32> to vector<1x1x16xf32>
    %217 = vector.shape_cast %216 : vector<1x1x16xf32> to vector<1x16xf32>
    %218 = vector.broadcast %215 : f32 to vector<1x16xf32>
    %219 = arith.mulf %218, %217 : vector<1x16xf32>
    %c0_77 = arith.constant 0 : index
    %c28 = arith.constant 28 : index
    %220 = memref.load %arg11[%c0_77, %c28] : memref<1x40xf32, #tpu.memory_space<smem>>
    %221 = vector.extract_strided_slice %199 {offsets = [0, 4, 0], sizes = [1, 1, 16], strides = [1, 1, 1]} : vector<1x16x16xf32> to vector<1x1x16xf32>
    %222 = vector.shape_cast %221 : vector<1x1x16xf32> to vector<1x16xf32>
    %223 = vector.broadcast %220 : f32 to vector<1x16xf32>
    %224 = arith.mulf %223, %222 : vector<1x16xf32>
    %225 = arith.addf %204, %224 : vector<1x16xf32>
    %c0_78 = arith.constant 0 : index
    %c29 = arith.constant 29 : index
    %226 = memref.load %arg11[%c0_78, %c29] : memref<1x40xf32, #tpu.memory_space<smem>>
    %227 = vector.extract_strided_slice %199 {offsets = [0, 5, 0], sizes = [1, 1, 16], strides = [1, 1, 1]} : vector<1x16x16xf32> to vector<1x1x16xf32>
    %228 = vector.shape_cast %227 : vector<1x1x16xf32> to vector<1x16xf32>
    %229 = vector.broadcast %226 : f32 to vector<1x16xf32>
    %230 = arith.mulf %229, %228 : vector<1x16xf32>
    %231 = arith.addf %209, %230 : vector<1x16xf32>
    %c0_79 = arith.constant 0 : index
    %c30 = arith.constant 30 : index
    %232 = memref.load %arg11[%c0_79, %c30] : memref<1x40xf32, #tpu.memory_space<smem>>
    %233 = vector.extract_strided_slice %199 {offsets = [0, 6, 0], sizes = [1, 1, 16], strides = [1, 1, 1]} : vector<1x16x16xf32> to vector<1x1x16xf32>
    %234 = vector.shape_cast %233 : vector<1x1x16xf32> to vector<1x16xf32>
    %235 = vector.broadcast %232 : f32 to vector<1x16xf32>
    %236 = arith.mulf %235, %234 : vector<1x16xf32>
    %237 = arith.addf %214, %236 : vector<1x16xf32>
    %c0_80 = arith.constant 0 : index
    %c31 = arith.constant 31 : index
    %238 = memref.load %arg11[%c0_80, %c31] : memref<1x40xf32, #tpu.memory_space<smem>>
    %239 = vector.extract_strided_slice %199 {offsets = [0, 7, 0], sizes = [1, 1, 16], strides = [1, 1, 1]} : vector<1x16x16xf32> to vector<1x1x16xf32>
    %240 = vector.shape_cast %239 : vector<1x1x16xf32> to vector<1x16xf32>
    %241 = vector.broadcast %238 : f32 to vector<1x16xf32>
    %242 = arith.mulf %241, %240 : vector<1x16xf32>
    %243 = arith.addf %219, %242 : vector<1x16xf32>
    %c0_81 = arith.constant 0 : index
    %c32 = arith.constant 32 : index
    %244 = memref.load %arg11[%c0_81, %c32] : memref<1x40xf32, #tpu.memory_space<smem>>
    %245 = vector.extract_strided_slice %199 {offsets = [0, 8, 0], sizes = [1, 1, 16], strides = [1, 1, 1]} : vector<1x16x16xf32> to vector<1x1x16xf32>
    %246 = vector.shape_cast %245 : vector<1x1x16xf32> to vector<1x16xf32>
    %247 = vector.broadcast %244 : f32 to vector<1x16xf32>
    %248 = arith.mulf %247, %246 : vector<1x16xf32>
    %249 = arith.addf %225, %248 : vector<1x16xf32>
    %c0_82 = arith.constant 0 : index
    %c33 = arith.constant 33 : index
    %250 = memref.load %arg11[%c0_82, %c33] : memref<1x40xf32, #tpu.memory_space<smem>>
    %251 = vector.extract_strided_slice %199 {offsets = [0, 9, 0], sizes = [1, 1, 16], strides = [1, 1, 1]} : vector<1x16x16xf32> to vector<1x1x16xf32>
    %252 = vector.shape_cast %251 : vector<1x1x16xf32> to vector<1x16xf32>
    %253 = vector.broadcast %250 : f32 to vector<1x16xf32>
    %254 = arith.mulf %253, %252 : vector<1x16xf32>
    %255 = arith.addf %231, %254 : vector<1x16xf32>
    %c0_83 = arith.constant 0 : index
    %c34 = arith.constant 34 : index
    %256 = memref.load %arg11[%c0_83, %c34] : memref<1x40xf32, #tpu.memory_space<smem>>
    %257 = vector.extract_strided_slice %199 {offsets = [0, 10, 0], sizes = [1, 1, 16], strides = [1, 1, 1]} : vector<1x16x16xf32> to vector<1x1x16xf32>
    %258 = vector.shape_cast %257 : vector<1x1x16xf32> to vector<1x16xf32>
    %259 = vector.broadcast %256 : f32 to vector<1x16xf32>
    %260 = arith.mulf %259, %258 : vector<1x16xf32>
    %261 = arith.addf %237, %260 : vector<1x16xf32>
    %c0_84 = arith.constant 0 : index
    %c35 = arith.constant 35 : index
    %262 = memref.load %arg11[%c0_84, %c35] : memref<1x40xf32, #tpu.memory_space<smem>>
    %263 = vector.extract_strided_slice %199 {offsets = [0, 11, 0], sizes = [1, 1, 16], strides = [1, 1, 1]} : vector<1x16x16xf32> to vector<1x1x16xf32>
    %264 = vector.shape_cast %263 : vector<1x1x16xf32> to vector<1x16xf32>
    %265 = vector.broadcast %262 : f32 to vector<1x16xf32>
    %266 = arith.mulf %265, %264 : vector<1x16xf32>
    %267 = arith.addf %243, %266 : vector<1x16xf32>
    %c0_85 = arith.constant 0 : index
    %c36 = arith.constant 36 : index
    %268 = memref.load %arg11[%c0_85, %c36] : memref<1x40xf32, #tpu.memory_space<smem>>
    %269 = vector.extract_strided_slice %199 {offsets = [0, 12, 0], sizes = [1, 1, 16], strides = [1, 1, 1]} : vector<1x16x16xf32> to vector<1x1x16xf32>
    %270 = vector.shape_cast %269 : vector<1x1x16xf32> to vector<1x16xf32>
    %271 = vector.broadcast %268 : f32 to vector<1x16xf32>
    %272 = arith.mulf %271, %270 : vector<1x16xf32>
    %273 = arith.addf %249, %272 : vector<1x16xf32>
    %c0_86 = arith.constant 0 : index
    %c37 = arith.constant 37 : index
    %274 = memref.load %arg11[%c0_86, %c37] : memref<1x40xf32, #tpu.memory_space<smem>>
    %275 = vector.extract_strided_slice %199 {offsets = [0, 13, 0], sizes = [1, 1, 16], strides = [1, 1, 1]} : vector<1x16x16xf32> to vector<1x1x16xf32>
    %276 = vector.shape_cast %275 : vector<1x1x16xf32> to vector<1x16xf32>
    %277 = vector.broadcast %274 : f32 to vector<1x16xf32>
    %278 = arith.mulf %277, %276 : vector<1x16xf32>
    %279 = arith.addf %255, %278 : vector<1x16xf32>
    %c0_87 = arith.constant 0 : index
    %c38 = arith.constant 38 : index
    %280 = memref.load %arg11[%c0_87, %c38] : memref<1x40xf32, #tpu.memory_space<smem>>
    %281 = vector.extract_strided_slice %199 {offsets = [0, 14, 0], sizes = [1, 1, 16], strides = [1, 1, 1]} : vector<1x16x16xf32> to vector<1x1x16xf32>
    %282 = vector.shape_cast %281 : vector<1x1x16xf32> to vector<1x16xf32>
    %283 = vector.broadcast %280 : f32 to vector<1x16xf32>
    %284 = arith.mulf %283, %282 : vector<1x16xf32>
    %285 = arith.addf %261, %284 : vector<1x16xf32>
    %c0_88 = arith.constant 0 : index
    %c39 = arith.constant 39 : index
    %286 = memref.load %arg11[%c0_88, %c39] : memref<1x40xf32, #tpu.memory_space<smem>>
    %287 = vector.extract_strided_slice %199 {offsets = [0, 15, 0], sizes = [1, 1, 16], strides = [1, 1, 1]} : vector<1x16x16xf32> to vector<1x1x16xf32>
    %288 = vector.shape_cast %287 : vector<1x1x16xf32> to vector<1x16xf32>
    %289 = vector.broadcast %286 : f32 to vector<1x16xf32>
    %290 = arith.mulf %289, %288 : vector<1x16xf32>
    %291 = arith.addf %267, %290 : vector<1x16xf32>
    %292 = arith.addf %273, %279 : vector<1x16xf32>
    %293 = arith.addf %292, %285 : vector<1x16xf32>
    %294 = arith.addf %293, %291 : vector<1x16xf32>
    %c0_89 = arith.constant 0 : index
    %c4_90 = arith.constant 4 : index
    %295 = memref.load %arg12[%c0_89, %c4_90] : memref<1x5xf32, #tpu.memory_space<smem>>
    %296 = vector.broadcast %295 : f32 to vector<1x16xf32>
    %297 = arith.addf %294, %296 : vector<1x16xf32>
    %cst_91 = arith.constant 0.000000e+00 : f32
    %298 = vector.broadcast %cst_91 : f32 to vector<1x16xf32>
    %299 = arith.subf %298, %297 : vector<1x16xf32>
    %300 = math.exp %299 : vector<1x16xf32>
    %cst_92 = arith.constant 1.000000e+00 : f32
    %301 = vector.broadcast %cst_92 : f32 to vector<1x16xf32>
    %302 = arith.addf %301, %300 : vector<1x16xf32>
    %303 = tpu.reciprocal %302 {approx = true} : vector<1x16xf32> -> vector<1x16xf32>
    %c0_93 = arith.constant 0 : index
    %c0_94 = arith.constant 0 : index
    %304 = vector.load %arg10[%c0_93, %c0_94] : memref<16x256xf32, #tpu.memory_space<vmem>>, vector<16x256xf32>
    %cst_95 = arith.constant dense<0.000000e+00> : vector<1x256xf32>
    %305 = tpu.matmul %303, %304, %cst_95 {dimension_numbers = #tpu.dot_dimension_numbers<[1], [0], [0], [1], [0, 0, 1, 1], [], []>} : vector<1x16xf32>, vector<16x256xf32>, vector<1x256xf32> -> vector<1x256xf32>
    %306 = arith.addf %197, %305 : vector<1x256xf32>
    %cst_96 = arith.constant 0.000000e+00 : f32
    %307 = vector.broadcast %cst_96 : f32 to vector<1x256xf32>
    %308 = arith.subf %307, %306 : vector<1x256xf32>
    %309 = math.exp %308 : vector<1x256xf32>
    %cst_97 = arith.constant 1.000000e+00 : f32
    %310 = vector.broadcast %cst_97 : f32 to vector<1x256xf32>
    %311 = arith.addf %310, %309 : vector<1x256xf32>
    %312 = tpu.reciprocal %311 {approx = true} : vector<1x256xf32> -> vector<1x256xf32>
    %c0_98 = arith.constant 0 : index
    %c0_99 = arith.constant 0 : index
    %c0_100 = arith.constant 0 : index
    %313 = vector.load %arg14[%c0_98, %c0_99, %c0_100] : memref<1x1x256xf32, #tpu.memory_space<vmem>>, vector<1x1x256xf32>
    %314 = vector.shape_cast %313 : vector<1x1x256xf32> to vector<1x256xf32>
    %315 = vector.shape_cast %312 : vector<1x256xf32> to vector<1x1x256xf32>
    tpu.vector_store %arg14[%c0_98, %c0_99, %c0_100], %315 {strides = array<i32>} : memref<1x1x256xf32, #tpu.memory_space<vmem>>, vector<1x1x256xf32>,
    return
  }
  func.func @transform_0(%arg0: i32) -> (i32, i32, i32, i32) {
    %c0_i32 = arith.constant 0 : i32
    %c0_i32_0 = arith.constant 0 : i32
    %c0_i32_1 = arith.constant 0 : i32
    %c0_i32_2 = arith.constant 0 : i32
    return %arg0, %c0_i32, %c0_i32_0, %c0_i32_1 : i32, i32, i32, i32
  }
  func.func @transform_1(%arg0: i32) -> (i32, i32, i32, i32) {
    %c0_i32 = arith.constant 0 : i32
    %c0_i32_0 = arith.constant 0 : i32
    %c0_i32_1 = arith.constant 0 : i32
    %c0_i32_2 = arith.constant 0 : i32
    return %arg0, %c0_i32, %c0_i32_0, %c0_i32_1 : i32, i32, i32, i32
  }
  func.func @transform_2(%arg0: i32) -> (i32, i32, i32, i32) {
    %c0_i32 = arith.constant 0 : i32
    %c0_i32_0 = arith.constant 0 : i32
    %c0_i32_1 = arith.constant 0 : i32
    %c0_i32_2 = arith.constant 0 : i32
    return %arg0, %c0_i32, %c0_i32_0, %c0_i32_1 : i32, i32, i32, i32
  }
  func.func @transform_3(%arg0: i32) -> (i32, i32, i32, i32) {
    %c0_i32 = arith.constant 0 : i32
    %c0_i32_0 = arith.constant 0 : i32
    %c0_i32_1 = arith.constant 0 : i32
    %c0_i32_2 = arith.constant 0 : i32
    return %arg0, %c0_i32, %c0_i32_0, %c0_i32_1 : i32, i32, i32, i32
  }
  func.func @transform_4(%arg0: i32) -> (i32, i32, i32, i32) {
    %c0_i32 = arith.constant 0 : i32
    %c0_i32_0 = arith.constant 0 : i32
    %c0_i32_1 = arith.constant 0 : i32
    %c0_i32_2 = arith.constant 0 : i32
    return %arg0, %c0_i32, %c0_i32_0, %c0_i32_1 : i32, i32, i32, i32
  }
  func.func @transform_5(%arg0: i32) -> (i32, i32) {
    %c0_i32 = arith.constant 0 : i32
    %c0_i32_0 = arith.constant 0 : i32
    %c0_i32_1 = arith.constant 0 : i32
    return %c0_i32, %c0_i32_0 : i32, i32
  }
  func.func @transform_6(%arg0: i32) -> (i32, i32) {
    %c0_i32 = arith.constant 0 : i32
    %c0_i32_0 = arith.constant 0 : i32
    %c0_i32_1 = arith.constant 0 : i32
    return %c0_i32, %c0_i32_0 : i32, i32
  }
  func.func @transform_7(%arg0: i32) -> (i32, i32) {
    %c0_i32 = arith.constant 0 : i32
    %c0_i32_0 = arith.constant 0 : i32
    %c0_i32_1 = arith.constant 0 : i32
    return %c0_i32, %c0_i32_0 : i32, i32
  }
  func.func @transform_8(%arg0: i32) -> (i32, i32) {
    %c0_i32 = arith.constant 0 : i32
    %c0_i32_0 = arith.constant 0 : i32
    %c0_i32_1 = arith.constant 0 : i32
    return %c0_i32, %c0_i32_0 : i32, i32
  }
  func.func @transform_9(%arg0: i32) -> (i32, i32) {
    %c0_i32 = arith.constant 0 : i32
    %c0_i32_0 = arith.constant 0 : i32
    %c0_i32_1 = arith.constant 0 : i32
    return %c0_i32, %c0_i32_0 : i32, i32
  }
  func.func @transform_10(%arg0: i32) -> (i32, i32) {
    %c0_i32 = arith.constant 0 : i32
    %c0_i32_0 = arith.constant 0 : i32
    %c0_i32_1 = arith.constant 0 : i32
    return %c0_i32, %c0_i32_0 : i32, i32
  }
  func.func @transform_11(%arg0: i32) -> (i32, i32) {
    %c0_i32 = arith.constant 0 : i32
    %c0_i32_0 = arith.constant 0 : i32
    %c0_i32_1 = arith.constant 0 : i32
    return %c0_i32, %c0_i32_0 : i32, i32
  }
  func.func @transform_12(%arg0: i32) -> (i32, i32) {
    %c0_i32 = arith.constant 0 : i32
    %c0_i32_0 = arith.constant 0 : i32
    %c0_i32_1 = arith.constant 0 : i32
    return %c0_i32, %c0_i32_0 : i32, i32
  }
  func.func @transform_13(%arg0: i32) -> (i32, i32, i32) {
    %c0_i32 = arith.constant 0 : i32
    %c0_i32_0 = arith.constant 0 : i32
    %c0_i32_1 = arith.constant 0 : i32
    return %arg0, %c0_i32, %c0_i32_0 : i32, i32, i32
  }
}

</mosaic_0001>

<llo_original>
// kernel: tpu_custom_call.1
$region0: #{tpu_custom_call.1}
  #allocation0 [shape = 'u32[]', space=smem, size = 0x4, offset = 0x4, fixed_abs, tag = 'smem constant byte address 0x4 - core index']
  #allocation1 [shape = 'u32[144,128]{1,0:T(1,128)}', space=vmem, size = 0x12000, scoped, tag = 'internal scratch']
  #allocation2 [shape = 'f32[1,1]{1,0:T(1,128)S(6)}', space=smem, size = 0x200, scoped, tag = 'scoped memory for tpu_custom_call.1']
  %s0 = inlined_call_operand.hbm [shape: f32[2,1,4,256], index: 0, kind: input, shape index: {}]
  %s1 = inlined_call_operand.hbm [shape: f32[2,1,4,256], index: 1, kind: input, shape index: {}]
  %s2 = inlined_call_operand.hbm [shape: f32[2,1,8,64], index: 2, kind: input, shape index: {}]
  %s3 = inlined_call_operand.hbm [shape: f32[2,1,8,64], index: 3, kind: input, shape index: {}]
  %s4 = inlined_call_operand.hbm [shape: f32[2,1,16,16], index: 4, kind: input, shape index: {}]
  %s5 = inlined_call_operand.hbm [shape: f32[256,256], index: 5, kind: input, shape index: {}]
  %s6 = inlined_call_operand.hbm [shape: f32[256,256], index: 6, kind: input, shape index: {}]
  %s7 = inlined_call_operand.hbm [shape: f32[64,256], index: 7, kind: input, shape index: {}]
  %s8 = inlined_call_operand.hbm [shape: f32[64,256], index: 8, kind: input, shape index: {}]
  %s9 = inlined_call_operand.vmem [shape: f32[16,256], index: 9, kind: input, shape index: {}]
  %s10 = inlined_call_operand.vmem [shape: f32[1,40], index: 10, kind: input, shape index: {}]
  %s11 = inlined_call_operand.vmem [shape: f32[1,5], index: 11, kind: input, shape index: {}]
  %s12 = inlined_call_operand.<no memory space> [shape: f32[1,1], index: 12, kind: input, shape index: {}]
  %s13 = inlined_call_operand.hbm [shape: f32[2,1,256], index: 13, kind: output, shape index: {}]
  %s14 = sld [smem:[#allocation0]]
  $region129: #{tpu_custom_call.1} parent=0
    _
  %s16 = ssub.s32 1, %s14
  %s17 = scalar_select 0, %s16, %s14
  %18 = sst [smem:[#allocation2]] %s12
  $region1: #{tpu_custom_call.1} parent=0
    #allocation3 [shape = 'u8[8192]{0}', space=vmem, size = 0x2000, scoped, tag = 'input window, operand 0']
    #allocation4 [shape = 's32[2]{0}', space=sflag, size = 0x8, scoped, tag = 'scoped memory for tpu_custom_call.1']
    #allocation5 [shape = 's32[2]{0}', space=sflag, size = 0x8, scoped, tag = 'scoped memory for tpu_custom_call.1']
    #allocation6 [shape = 's32[2]{0}', space=sflag, size = 0x8, scoped, tag = 'scoped memory for tpu_custom_call.1']
    #allocation7 [shape = 'u8[8192]{0}', space=vmem, size = 0x2000, scoped, tag = 'input window, operand 1']
    #allocation8 [shape = 's32[2]{0}', space=sflag, size = 0x8, scoped, tag = 'scoped memory for tpu_custom_call.1']
    #allocation9 [shape = 'u8[8192]{0}', space=vmem, size = 0x2000, scoped, tag = 'input window, operand 2']
    #allocation10 [shape = 'u8[8192]{0}', space=vmem, size = 0x2000, scoped, tag = 'input window, operand 3']
    #allocation11 [shape = 's32[2]{0}', space=sflag, size = 0x8, scoped, tag = 'scoped memory for tpu_custom_call.1']
    #allocation12 [shape = 'u8[16384]{0}', space=vmem, size = 0x4000, scoped, tag = 'input window, operand 4']
    #allocation13 [shape = 'u8[262144]{0}', space=vmem, size = 0x40000, scoped, tag = 'input window, operand 5, single buffered']
    #allocation14 [shape = 's32[1]{0}', space=sflag, size = 0x4, scoped, tag = 'scoped memory for tpu_custom_call.1']
    #allocation15 [shape = 'u8[262144]{0}', space=vmem, size = 0x40000, scoped, tag = 'input window, operand 6, single buffered']
    #allocation16 [shape = 'u8[65536]{0}', space=vmem, size = 0x10000, scoped, tag = 'input window, operand 7, single buffered']
    #allocation17 [shape = 's32[1]{0}', space=sflag, size = 0x4, scoped, tag = 'scoped memory for tpu_custom_call.1']
    #allocation18 [shape = 'u8[65536]{0}', space=vmem, size = 0x10000, scoped, tag = 'input window, operand 8, single buffered']
    #allocation19 [shape = 'u8[512]{0}', space=smem, size = 0x200, scoped, tag = 'input window, operand 10, single buffered']
    #allocation20 [shape = 'u8[512]{0}', space=smem, size = 0x200, scoped, tag = 'input window, operand 11, single buffered']
    #allocation21 [shape = 's32[1]{0}', space=sflag, size = 0x4, scoped, tag = 'scoped memory for tpu_custom_call.1']
    #allocation22 [shape = 'u8[2048]{0}', space=vmem, size = 0x800, scoped, tag = 'output window, operand 0']
    %19 = vsyncpa [#allocation4], 0
    %s20 = scalar_lea.sflag [#allocation4], 1
    %21 = vsyncpa %s20, 0
    %22 = vsyncpa [#allocation8], 0
    %s23 = scalar_lea.sflag [#allocation8], 1
    %24 = vsyncpa %s23, 0
    %25 = vsyncpa [#allocation11], 0
    %s26 = scalar_lea.sflag [#allocation11], 1
    %27 = vsyncpa %s26, 0
    %28 = vsyncpa [#allocation14], 0
    %29 = vsyncpa [#allocation17], 0
    %30 = vsyncpa [#allocation6], 0
    %31 = vsyncpa [#allocation21], 0
    %32 = vsyncpa [#allocation5], 0
    %s33 = scalar_lea.sflag [#allocation5], 1
    %34 = vsyncpa %s33, 0
    loop: start=0, step=1, limit=4
    $region2: #{tpu_custom_call.1} parent=1 // loop_pre_header
      _
    $region3: #{tpu_custom_call.1} parent=1 // loop_header
      %s36 = sphi 0, %s40
      %p37 = scmp.ge.s32.totalorder %s36, 4
      %s46 = sphi 0, %s48
      %s49 = sphi 0, %s46
      %s50 = sphi 0, %s49
      %s66 = sphi 0, %s50
      %s72 = sphi 0, %s74
      %s75 = sphi 0, %s72
      %s76 = sphi 0, %s75
      %s92 = sphi 0, %s76
      %s98 = sphi 0, %s100
      %s101 = sphi 0, %s98
      %s102 = sphi 0, %s101
      %s118 = sphi 0, %s102
      %s124 = sphi 0, %s126
      %s127 = sphi 0, %s124
      %s128 = sphi 0, %s127
      %s144 = sphi 0, %s128
      %s150 = sphi 0, %s152
      %s153 = sphi 0, %s150
      %s154 = sphi 0, %s153
      %s170 = sphi 0, %s154
      %s174 = sphi 0, %s174
      %s176 = sphi 0, %s174
      %s177 = sphi 0, %s176
      %s191 = sphi 0, %s177
      %s195 = sphi 0, %s195
      %s197 = sphi 0, %s195
      %s198 = sphi 0, %s197
      %s212 = sphi 0, %s198
      %s216 = sphi 0, %s216
      %s218 = sphi 0, %s216
      %s219 = sphi 0, %s218
      %s233 = sphi 0, %s219
      %s237 = sphi 0, %s237
      %s239 = sphi 0, %s237
      %s240 = sphi 0, %s239
      %s254 = sphi 0, %s240
      %s258 = sphi 0, %s258
      %s260 = sphi 0, %s258
      %s261 = sphi 0, %s260
      %s275 = sphi 0, %s261
      %s279 = sphi 0, %s279
      %s281 = sphi 0, %s279
      %s282 = sphi 0, %s281
      %s296 = sphi 0, %s282
      %s300 = sphi 0, %s300
      %s302 = sphi 0, %s300
      %s303 = sphi 0, %s302
      %s317 = sphi 0, %s303
      %s321 = sphi 0, %s321
      %s323 = sphi 0, %s321
      %s324 = sphi 0, %s323
      %s338 = sphi 0, %s324
      %s344 = sphi 0, %s346
      %s347 = sphi 0, %s344
      %s348 = sphi 0, %s347
      %s364 = sphi 0, %s348
    $region4: #{tpu_custom_call.1} parent=1 // loop_header_branch
      %39 = sbr.rel (%p37) target = $region8
    $region5: #{tpu_custom_call.1} parent=1 // loop_body
      %s41 = ssub.s32 %s36, 1
      %s42 = ssub.s32 %s36, 2
      %s43 = sadd.s32 %s36, 1
      %s44 = ssub.s32 %s36, %s43
      %p45 = scmp.eq.s32.totalorder %s44, 0
      %s47 = sadd.s32 %s46, 1
      %s48 = scalar_select %p45, %s46, %s47
      %p51 = pneg %p45
      %p52 = scmp.eq.s32.totalorder %s36, 1
      %p53 = por %p51, %p52
      %p54 = scmp.ne.s32.totalorder %s46, %s49
      %p55 = scmp.eq.s32.totalorder %s36, 0
      %p56 = por %p54, %p55
      %p57 = scmp.ne.s32.totalorder %s46, %s49
      %p58 = scmp.eq.s32.totalorder %s41, 1
      %p59 = por %p57, %p58
      %p60 = scmp.ne.s32.totalorder %s49, %s50
      %p61 = scmp.eq.s32.totalorder %s41, 0
      %p62 = por %p60, %p61
      %p63 = scmp.ne.s32.totalorder %s49, %s50
      %p64 = scmp.eq.s32.totalorder %s42, 1
      %p65 = por %p63, %p64
      %p67 = scmp.ne.s32.totalorder %s50, %s66
      %p68 = scmp.eq.s32.totalorder %s42, 0
      %p69 = por %p67, %p68
      %s70 = ssub.s32 %s36, %s43
      %p71 = scmp.eq.s32.totalorder %s70, 0
      %s73 = sadd.s32 %s72, 1
      %s74 = scalar_select %p71, %s72, %s73
      %p77 = pneg %p71
      %p78 = scmp.eq.s32.totalorder %s36, 1
      %p79 = por %p77, %p78
      %p80 = scmp.ne.s32.totalorder %s72, %s75
      %p81 = scmp.eq.s32.totalorder %s36, 0
      %p82 = por %p80, %p81
      %p83 = scmp.ne.s32.totalorder %s72, %s75
      %p84 = scmp.eq.s32.totalorder %s41, 1
      %p85 = por %p83, %p84
      %p86 = scmp.ne.s32.totalorder %s75, %s76
      %p87 = scmp.eq.s32.totalorder %s41, 0
      %p88 = por %p86, %p87
      %p89 = scmp.ne.s32.totalorder %s75, %s76
      %p90 = scmp.eq.s32.totalorder %s42, 1
      %p91 = por %p89, %p90
      %p93 = scmp.ne.s32.totalorder %s76, %s92
      %p94 = scmp.eq.s32.totalorder %s42, 0
      %p95 = por %p93, %p94
      %s96 = ssub.s32 %s36, %s43
      %p97 = scmp.eq.s32.totalorder %s96, 0
      %s99 = sadd.s32 %s98, 1
      %s100 = scalar_select %p97, %s98, %s99
      %p103 = pneg %p97
      %p104 = scmp.eq.s32.totalorder %s36, 1
      %p105 = por %p103, %p104
      %p106 = scmp.ne.s32.totalorder %s98, %s101
      %p107 = scmp.eq.s32.totalorder %s36, 0
      %p108 = por %p106, %p107
      %p109 = scmp.ne.s32.totalorder %s98, %s101
      %p110 = scmp.eq.s32.totalorder %s41, 1
      %p111 = por %p109, %p110
      %p112 = scmp.ne.s32.totalorder %s101, %s102
      %p113 = scmp.eq.s32.totalorder %s41, 0
      %p114 = por %p112, %p113
      %p115 = scmp.ne.s32.totalorder %s101, %s102
      %p116 = scmp.eq.s32.totalorder %s42, 1
      %p117 = por %p115, %p116
      %p119 = scmp.ne.s32.totalorder %s102, %s118
      %p120 = scmp.eq.s32.totalorder %s42, 0
      %p121 = por %p119, %p120
      %s122 = ssub.s32 %s36, %s43
      %p123 = scmp.eq.s32.totalorder %s122, 0
      %s125 = sadd.s32 %s124, 1
      %s126 = scalar_select %p123, %s124, %s125
      %p129 = pneg %p123
      %p130 = scmp.eq.s32.totalorder %s36, 1
      %p131 = por %p129, %p130
      %p132 = scmp.ne.s32.totalorder %s124, %s127
      %p133 = scmp.eq.s32.totalorder %s36, 0
      %p134 = por %p132, %p133
      %p135 = scmp.ne.s32.totalorder %s124, %s127
      %p136 = scmp.eq.s32.totalorder %s41, 1
      %p137 = por %p135, %p136
      %p138 = scmp.ne.s32.totalorder %s127, %s128
      %p139 = scmp.eq.s32.totalorder %s41, 0
      %p140 = por %p138, %p139
      %p141 = scmp.ne.s32.totalorder %s127, %s128
      %p142 = scmp.eq.s32.totalorder %s42, 1
      %p143 = por %p141, %p142
      %p145 = scmp.ne.s32.totalorder %s128, %s144
      %p146 = scmp.eq.s32.totalorder %s42, 0
      %p147 = por %p145, %p146
      %s148 = ssub.s32 %s36, %s43
      %p149 = scmp.eq.s32.totalorder %s148, 0
      %s151 = sadd.s32 %s150, 1
      %s152 = scalar_select %p149, %s150, %s151
      %p155 = pneg %p149
      %p156 = scmp.eq.s32.totalorder %s36, 1
      %p157 = por %p155, %p156
      %p158 = scmp.ne.s32.totalorder %s150, %s153
      %p159 = scmp.eq.s32.totalorder %s36, 0
      %p160 = por %p158, %p159
      %p161 = scmp.ne.s32.totalorder %s150, %s153
      %p162 = scmp.eq.s32.totalorder %s41, 1
      %p163 = por %p161, %p162
      %p164 = scmp.ne.s32.totalorder %s153, %s154
      %p165 = scmp.eq.s32.totalorder %s41, 0
      %p166 = por %p164, %p165
      %p167 = scmp.ne.s32.totalorder %s153, %s154
      %p168 = scmp.eq.s32.totalorder %s42, 1
      %p169 = por %p167, %p168
      %p171 = scmp.ne.s32.totalorder %s154, %s170
      %p172 = scmp.eq.s32.totalorder %s42, 0
      %p173 = por %p171, %p172
      %s175 = sadd.s32 %s174, 1
      %p178 = scmp.eq.s32.totalorder %s36, 1
      %p179 = scmp.ne.s32.totalorder %s174, %s176
      %p180 = scmp.eq.s32.totalorder %s36, 0
      %p181 = por %p179, %p180
      %p182 = scmp.ne.s32.totalorder %s174, %s176
      %p183 = scmp.eq.s32.totalorder %s41, 1
      %p184 = por %p182, %p183
      %p185 = scmp.ne.s32.totalorder %s176, %s177
      %p186 = scmp.eq.s32.totalorder %s41, 0
      %p187 = por %p185, %p186
      %p188 = scmp.ne.s32.totalorder %s176, %s177
      %p189 = scmp.eq.s32.totalorder %s42, 1
      %p190 = por %p188, %p189
      %p192 = scmp.ne.s32.totalorder %s177, %s191
      %p193 = scmp.eq.s32.totalorder %s42, 0
      %p194 = por %p192, %p193
      %s196 = sadd.s32 %s195, 1
      %p199 = scmp.eq.s32.totalorder %s36, 1
      %p200 = scmp.ne.s32.totalorder %s195, %s197
      %p201 = scmp.eq.s32.totalorder %s36, 0
      %p202 = por %p200, %p201
      %p203 = scmp.ne.s32.totalorder %s195, %s197
      %p204 = scmp.eq.s32.totalorder %s41, 1
      %p205 = por %p203, %p204
      %p206 = scmp.ne.s32.totalorder %s197, %s198
      %p207 = scmp.eq.s32.totalorder %s41, 0
      %p208 = por %p206, %p207
      %p209 = scmp.ne.s32.totalorder %s197, %s198
      %p210 = scmp.eq.s32.totalorder %s42, 1
      %p211 = por %p209, %p210
      %p213 = scmp.ne.s32.totalorder %s198, %s212
      %p214 = scmp.eq.s32.totalorder %s42, 0
      %p215 = por %p213, %p214
      %s217 = sadd.s32 %s216, 1
      %p220 = scmp.eq.s32.totalorder %s36, 1
      %p221 = scmp.ne.s32.totalorder %s216, %s218
      %p222 = scmp.eq.s32.totalorder %s36, 0
      %p223 = por %p221, %p222
      %p224 = scmp.ne.s32.totalorder %s216, %s218
      %p225 = scmp.eq.s32.totalorder %s41, 1
      %p226 = por %p224, %p225
      %p227 = scmp.ne.s32.totalorder %s218, %s219
      %p228 = scmp.eq.s32.totalorder %s41, 0
      %p229 = por %p227, %p228
      %p230 = scmp.ne.s32.totalorder %s218, %s219
      %p231 = scmp.eq.s32.totalorder %s42, 1
      %p232 = por %p230, %p231
      %p234 = scmp.ne.s32.totalorder %s219, %s233
      %p235 = scmp.eq.s32.totalorder %s42, 0
      %p236 = por %p234, %p235
      %s238 = sadd.s32 %s237, 1
      %p241 = scmp.eq.s32.totalorder %s36, 1
      %p242 = scmp.ne.s32.totalorder %s237, %s239
      %p243 = scmp.eq.s32.totalorder %s36, 0
      %p244 = por %p242, %p243
      %p245 = scmp.ne.s32.totalorder %s237, %s239
      %p246 = scmp.eq.s32.totalorder %s41, 1
      %p247 = por %p245, %p246
      %p248 = scmp.ne.s32.totalorder %s239, %s240
      %p249 = scmp.eq.s32.totalorder %s41, 0
      %p250 = por %p248, %p249
      %p251 = scmp.ne.s32.totalorder %s239, %s240
      %p252 = scmp.eq.s32.totalorder %s42, 1
      %p253 = por %p251, %p252
      %p255 = scmp.ne.s32.totalorder %s240, %s254
      %p256 = scmp.eq.s32.totalorder %s42, 0
      %p257 = por %p255, %p256
      %s259 = sadd.s32 %s258, 1
      %p262 = scmp.eq.s32.totalorder %s36, 1
      %p263 = scmp.ne.s32.totalorder %s258, %s260
      %p264 = scmp.eq.s32.totalorder %s36, 0
      %p265 = por %p263, %p264
      %p266 = scmp.ne.s32.totalorder %s258, %s260
      %p267 = scmp.eq.s32.totalorder %s41, 1
      %p268 = por %p266, %p267
      %p269 = scmp.ne.s32.totalorder %s260, %s261
      %p270 = scmp.eq.s32.totalorder %s41, 0
      %p271 = por %p269, %p270
      %p272 = scmp.ne.s32.totalorder %s260, %s261
      %p273 = scmp.eq.s32.totalorder %s42, 1
      %p274 = por %p272, %p273
      %p276 = scmp.ne.s32.totalorder %s261, %s275
      %p277 = scmp.eq.s32.totalorder %s42, 0
      %p278 = por %p276, %p277
      %s280 = sadd.s32 %s279, 1
      %p283 = scmp.eq.s32.totalorder %s36, 1
      %p284 = scmp.ne.s32.totalorder %s279, %s281
      %p285 = scmp.eq.s32.totalorder %s36, 0
      %p286 = por %p284, %p285
      %p287 = scmp.ne.s32.totalorder %s279, %s281
      %p288 = scmp.eq.s32.totalorder %s41, 1
      %p289 = por %p287, %p288
      %p290 = scmp.ne.s32.totalorder %s281, %s282
      %p291 = scmp.eq.s32.totalorder %s41, 0
      %p292 = por %p290, %p291
      %p293 = scmp.ne.s32.totalorder %s281, %s282
      %p294 = scmp.eq.s32.totalorder %s42, 1
      %p295 = por %p293, %p294
      %p297 = scmp.ne.s32.totalorder %s282, %s296
      %p298 = scmp.eq.s32.totalorder %s42, 0
      %p299 = por %p297, %p298
      %s301 = sadd.s32 %s300, 1
      %p304 = scmp.eq.s32.totalorder %s36, 1
      %p305 = scmp.ne.s32.totalorder %s300, %s302
      %p306 = scmp.eq.s32.totalorder %s36, 0
      %p307 = por %p305, %p306
      %p308 = scmp.ne.s32.totalorder %s300, %s302
      %p309 = scmp.eq.s32.totalorder %s41, 1
      %p310 = por %p308, %p309
      %p311 = scmp.ne.s32.totalorder %s302, %s303
      %p312 = scmp.eq.s32.totalorder %s41, 0
      %p313 = por %p311, %p312
      %p314 = scmp.ne.s32.totalorder %s302, %s303
      %p315 = scmp.eq.s32.totalorder %s42, 1
      %p316 = por %p314, %p315
      %p318 = scmp.ne.s32.totalorder %s303, %s317
      %p319 = scmp.eq.s32.totalorder %s42, 0
      %p320 = por %p318, %p319
      %s322 = sadd.s32 %s321, 1
      %p325 = scmp.eq.s32.totalorder %s36, 1
      %p326 = scmp.ne.s32.totalorder %s321, %s323
      %p327 = scmp.eq.s32.totalorder %s36, 0
      %p328 = por %p326, %p327
      %p329 = scmp.ne.s32.totalorder %s321, %s323
      %p330 = scmp.eq.s32.totalorder %s41, 1
      %p331 = por %p329, %p330
      %p332 = scmp.ne.s32.totalorder %s323, %s324
      %p333 = scmp.eq.s32.totalorder %s41, 0
      %p334 = por %p332, %p333
      %p335 = scmp.ne.s32.totalorder %s323, %s324
      %p336 = scmp.eq.s32.totalorder %s42, 1
      %p337 = por %p335, %p336
      %p339 = scmp.ne.s32.totalorder %s324, %s338
      %p340 = scmp.eq.s32.totalorder %s42, 0
      %p341 = por %p339, %p340
      %s342 = ssub.s32 %s36, %s43
      %p343 = scmp.eq.s32.totalorder %s342, 0
      %s345 = sadd.s32 %s344, 1
      %s346 = scalar_select %p343, %s344, %s345
      %p349 = pneg %p343
      %p350 = scmp.eq.s32.totalorder %s36, 1
      %p351 = por %p349, %p350
      %p352 = scmp.ne.s32.totalorder %s344, %s347
      %p353 = scmp.eq.s32.totalorder %s36, 0
      %p354 = por %p352, %p353
      %p355 = scmp.ne.s32.totalorder %s344, %s347
      %p356 = scmp.eq.s32.totalorder %s41, 1
      %p357 = por %p355, %p356
      %p358 = scmp.ne.s32.totalorder %s347, %s348
      %p359 = scmp.eq.s32.totalorder %s41, 0
      %p360 = por %p358, %p359
      %p361 = scmp.ne.s32.totalorder %s347, %s348
      %p362 = scmp.eq.s32.totalorder %s42, 1
      %p363 = por %p361, %p362
      %p365 = scmp.ne.s32.totalorder %s348, %s364
      %p366 = scmp.eq.s32.totalorder %s42, 0
      %p367 = por %p365, %p366
      %p368 = scmp.le.s32.totalorder 1, %s36
      %p369 = scmp.lt.s32.totalorder %s36, 3
      %p370 = pnand %p368, %p369
      %p371 = pneg %p370
      // Predicated region
      $region9: #{tpu_custom_call.1} parent=5 // pred_check
        _
      $region10: #{tpu_custom_call.1} parent=5 // pred_check_branch
        %373 = sbr.rel (%p370) target = $region12
      $region11: #{tpu_custom_call.1} parent=5 // pred_region
        %s374 = ssub.s32 %s36, 1
        // Predicated region
        $region13: #{tpu_custom_call.1} parent=11 // pred_check
          %p375 = pneg %p187
        $region14: #{tpu_custom_call.1} parent=11 // pred_check_branch
          %377 = sbr.rel (%p375) target = $region16
        $region15: #{tpu_custom_call.1} parent=11 // pred_region
          %s379 = ssub.s32 8192, 8192
          %380 = vsyncadd [#allocation14], %s379
          %s381 = sshll.u32 [#allocation13], 4
          %s382 = int_to_ptr.vmem [resolvable:$true] %s381
          %387 = dma.hbm_to_vmem [thread:$0]  %s5, 8192, %s382, [#allocation14], 256, 256, 16
        $region16: #{tpu_custom_call.1} parent=11 // pred_fallthru
          _
        // Predicated region
        $region17: #{tpu_custom_call.1} parent=11 // pred_check
          %p388 = pneg %p208
        $region18: #{tpu_custom_call.1} parent=11 // pred_check_branch
          %390 = sbr.rel (%p388) target = $region20
        $region19: #{tpu_custom_call.1} parent=11 // pred_region
          %s392 = ssub.s32 8192, 8192
          %393 = vsyncadd [#allocation14], %s392
          %s394 = sshll.u32 [#allocation15], 4
          %s395 = int_to_ptr.vmem [resolvable:$true] %s394
          %400 = dma.hbm_to_vmem [thread:$0]  %s6, 8192, %s395, [#allocation14], 256, 256, 16
        $region20: #{tpu_custom_call.1} parent=11 // pred_fallthru
          _
        // Predicated region
        $region21: #{tpu_custom_call.1} parent=11 // pred_check
          %p401 = pneg %p229
        $region22: #{tpu_custom_call.1} parent=11 // pred_check_branch
          %403 = sbr.rel (%p401) target = $region24
        $region23: #{tpu_custom_call.1} parent=11 // pred_region
          %s405 = ssub.s32 2048, 2048
          %406 = vsyncadd [#allocation17], %s405
          %s407 = sshll.u32 [#allocation16], 4
          %s408 = int_to_ptr.vmem [resolvable:$true] %s407
          %413 = dma.hbm_to_vmem [thread:$0]  %s7, 2048, %s408, [#allocation17], 256, 256, 16
        $region24: #{tpu_custom_call.1} parent=11 // pred_fallthru
          _
        // Predicated region
        $region25: #{tpu_custom_call.1} parent=11 // pred_check
          %p414 = pneg %p250
        $region26: #{tpu_custom_call.1} parent=11 // pred_check_branch
          %416 = sbr.rel (%p414) target = $region28
        $region27: #{tpu_custom_call.1} parent=11 // pred_region
          %s418 = ssub.s32 2048, 2048
          %419 = vsyncadd [#allocation17], %s418
          %s420 = sshll.u32 [#allocation18], 4
          %s421 = int_to_ptr.vmem [resolvable:$true] %s420
          %426 = dma.hbm_to_vmem [thread:$0]  %s8, 2048, %s421, [#allocation17], 256, 256, 16
        $region28: #{tpu_custom_call.1} parent=11 // pred_fallthru
          _
        // Predicated region
        $region29: #{tpu_custom_call.1} parent=11 // pred_check
          %p427 = pneg %p271
        $region30: #{tpu_custom_call.1} parent=11 // pred_check_branch
          %429 = sbr.rel (%p427) target = $region32
        $region31: #{tpu_custom_call.1} parent=11 // pred_region
          _
        $region32: #{tpu_custom_call.1} parent=11 // pred_fallthru
          _
        // Predicated region
        $region33: #{tpu_custom_call.1} parent=11 // pred_check
          %p430 = pneg %p292
        $region34: #{tpu_custom_call.1} parent=11 // pred_check_branch
          %432 = sbr.rel (%p430) target = $region36
        $region35: #{tpu_custom_call.1} parent=11 // pred_region
          %s434 = ssub.s32 16, 16
          %435 = vsyncadd [#allocation6], %s434
          %s437 = sshll.u32 %s10, 4
          %s438 = int_to_ptr.vmem [resolvable:$true] %s437
          %440 = dma.vmem_to_smem %s438, 16, [#allocation19], [#allocation6]
        $region36: #{tpu_custom_call.1} parent=11 // pred_fallthru
          _
        // Predicated region
        $region37: #{tpu_custom_call.1} parent=11 // pred_check
          %p441 = pneg %p313
        $region38: #{tpu_custom_call.1} parent=11 // pred_check_branch
          %443 = sbr.rel (%p441) target = $region40
        $region39: #{tpu_custom_call.1} parent=11 // pred_region
          %s445 = ssub.s32 16, 16
          %446 = vsyncadd [#allocation21], %s445
          %s448 = sshll.u32 %s11, 4
          %s449 = int_to_ptr.vmem [resolvable:$true] %s448
          %451 = dma.vmem_to_smem %s449, 16, [#allocation20], [#allocation21]
        $region40: #{tpu_custom_call.1} parent=11 // pred_fallthru
          _
        // Predicated region
        $region41: #{tpu_custom_call.1} parent=11 // pred_check
          %p452 = pneg %p334
        $region42: #{tpu_custom_call.1} parent=11 // pred_check_branch
          %454 = sbr.rel (%p452) target = $region44
        $region43: #{tpu_custom_call.1} parent=11 // pred_region
          _
        $region44: #{tpu_custom_call.1} parent=11 // pred_fallthru
          _
      $region12: #{tpu_custom_call.1} parent=5 // pred_fallthru
        _
      %p455 = scmp.lt.s32.totalorder %s36, 2
      // Predicated region
      $region45: #{tpu_custom_call.1} parent=5 // pred_check
        %p456 = pneg %p455
      $region46: #{tpu_custom_call.1} parent=5 // pred_check_branch
        %458 = sbr.rel (%p456) target = $region48
      $region47: #{tpu_custom_call.1} parent=5 // pred_region
        // Predicated region
        $region49: #{tpu_custom_call.1} parent=47 // pred_check
          %p459 = pneg %p56
        $region50: #{tpu_custom_call.1} parent=47 // pred_check_branch
          %461 = sbr.rel (%p459) target = $region52
        $region51: #{tpu_custom_call.1} parent=47 // pred_region
          %s462 = sand.u32 %s46, 1
          %s463 = scalar_lea.sflag [#allocation4], %s462
          %s464 = sand.u32 %s46, 1
          %s465 = smul.addr %s464, 8
          %s466 = scalar_lea.vmem [#allocation3], %s465
          %s468 = ssub.s32 128, 128
          %469 = vsyncadd %s463, %s468
          %s470 = smul.addr %s36, 2
          %s471 = smul.addr %s470, 64
          %s472 = scalar_lea.hbm %s0, %s471
          %s474 = sshll.u32 %s466, 4
          %s475 = int_to_ptr.vmem [resolvable:$true] %s474
          %477 = dma.hbm_to_vmem [thread:$0]  %s472, 128, %s475, %s463
        $region52: #{tpu_custom_call.1} parent=47 // pred_fallthru
          _
        // Predicated region
        $region53: #{tpu_custom_call.1} parent=47 // pred_check
          %p478 = pneg %p82
        $region54: #{tpu_custom_call.1} parent=47 // pred_check_branch
          %480 = sbr.rel (%p478) target = $region56
        $region55: #{tpu_custom_call.1} parent=47 // pred_region
          %s481 = sand.u32 %s36, 1
          %s482 = scalar_lea.sflag [#allocation8], %s481
          %s483 = sand.u32 %s72, 1
          %s484 = smul.addr %s483, 8
          %s485 = scalar_lea.vmem [#allocation7], %s484
          %s487 = ssub.s32 128, 128
          %488 = vsyncadd %s482, %s487
          %s489 = smul.addr %s36, 2
          %s490 = smul.addr %s489, 64
          %s491 = scalar_lea.hbm %s1, %s490
          %s493 = sshll.u32 %s485, 4
          %s494 = int_to_ptr.vmem [resolvable:$true] %s493
          %496 = dma.hbm_to_vmem [thread:$0]  %s491, 128, %s494, %s482
        $region56: #{tpu_custom_call.1} parent=47 // pred_fallthru
          _
        // Predicated region
        $region57: #{tpu_custom_call.1} parent=47 // pred_check
          %p497 = pneg %p108
        $region58: #{tpu_custom_call.1} parent=47 // pred_check_branch
          %499 = sbr.rel (%p497) target = $region60
        $region59: #{tpu_custom_call.1} parent=47 // pred_region
          %s500 = sand.u32 %s36, 1
          %s501 = scalar_lea.sflag [#allocation8], %s500
          %s502 = sand.u32 %s98, 1
          %s503 = smul.addr %s502, 8
          %s504 = scalar_lea.vmem [#allocation9], %s503
          %s506 = ssub.s32 128, 128
          %507 = vsyncadd %s501, %s506
          %s508 = smul.addr %s36, 128
          %s509 = scalar_lea.hbm %s2, %s508
          %s511 = sshll.u32 %s504, 4
          %s512 = int_to_ptr.vmem [resolvable:$true] %s511
          %514 = dma.hbm_to_vmem [thread:$0]  %s509, 128, %s512, %s501
        $region60: #{tpu_custom_call.1} parent=47 // pred_fallthru
          _
        // Predicated region
        $region61: #{tpu_custom_call.1} parent=47 // pred_check
          %p515 = pneg %p134
        $region62: #{tpu_custom_call.1} parent=47 // pred_check_branch
          %517 = sbr.rel (%p515) target = $region64
        $region63: #{tpu_custom_call.1} parent=47 // pred_region
          %s518 = sand.u32 %s36, 1
          %s519 = scalar_lea.sflag [#allocation11], %s518
          %s520 = sand.u32 %s124, 1
          %s521 = smul.addr %s520, 8
          %s522 = scalar_lea.vmem [#allocation10], %s521
          %s524 = ssub.s32 128, 128
          %525 = vsyncadd %s519, %s524
          %s526 = smul.addr %s36, 128
          %s527 = scalar_lea.hbm %s3, %s526
          %s529 = sshll.u32 %s522, 4
          %s530 = int_to_ptr.vmem [resolvable:$true] %s529
          %532 = dma.hbm_to_vmem [thread:$0]  %s527, 128, %s530, %s519
        $region64: #{tpu_custom_call.1} parent=47 // pred_fallthru
          _
        // Predicated region
        $region65: #{tpu_custom_call.1} parent=47 // pred_check
          %p533 = pneg %p160
        $region66: #{tpu_custom_call.1} parent=47 // pred_check_branch
          %535 = sbr.rel (%p533) target = $region68
        $region67: #{tpu_custom_call.1} parent=47 // pred_region
          %s536 = sand.u32 %s36, 1
          %s537 = scalar_lea.sflag [#allocation11], %s536
          %s538 = sand.u32 %s150, 1
          %s539 = smul.addr %s538, 16
          %s540 = scalar_lea.vmem [#allocation12], %s539
          %s542 = ssub.s32 256, 256
          %543 = vsyncadd %s537, %s542
          %s544 = smul.addr %s36, 2
          %s545 = smul.addr %s544, 128
          %s546 = scalar_lea.hbm %s4, %s545
          %s547 = sshll.u32 %s540, 4
          %s548 = int_to_ptr.vmem [resolvable:$true] %s547
          %553 = dma.hbm_to_vmem [thread:$0]  %s546, 256, %s548, %s537, 128, 128, 8
        $region68: #{tpu_custom_call.1} parent=47 // pred_fallthru
          _
      $region48: #{tpu_custom_call.1} parent=5 // pred_fallthru
        _
      %p554 = scmp.le.s32.totalorder 1, %s36
      %p555 = scmp.lt.s32.totalorder %s36, 3
      %p556 = pnand %p554, %p555
      %p557 = pneg %p556
      // Predicated region
      $region69: #{tpu_custom_call.1} parent=5 // pred_check
        _
      $region70: #{tpu_custom_call.1} parent=5 // pred_check_branch
        %559 = sbr.rel (%p556) target = $region72
      $region71: #{tpu_custom_call.1} parent=5 // pred_region
        %s560 = ssub.s32 %s36, 1
        %s561 = sand.u32 %s49, 1
        %s562 = scalar_lea.sflag [#allocation4], %s561
        %s563 = sand.u32 %s49, 1
        %s564 = smul.addr %s563, 8
        %s565 = scalar_lea.vmem [#allocation3], %s564
        // Predicated region
        $region73: #{tpu_custom_call.1} parent=71 // pred_check
          %p566 = pneg %p62
        $region74: #{tpu_custom_call.1} parent=71 // pred_check_branch
          %568 = sbr.rel (%p566) target = $region76
        $region75: #{tpu_custom_call.1} parent=71 // pred_region
          %569 = dma.done %s562, 128
        $region76: #{tpu_custom_call.1} parent=71 // pred_fallthru
          _
        %s570 = sand.u32 %s41, 1
        %s571 = scalar_lea.sflag [#allocation8], %s570
        %s572 = sand.u32 %s75, 1
        %s573 = smul.addr %s572, 8
        %s574 = scalar_lea.vmem [#allocation7], %s573
        // Predicated region
        $region77: #{tpu_custom_call.1} parent=71 // pred_check
          %p575 = pneg %p88
        $region78: #{tpu_custom_call.1} parent=71 // pred_check_branch
          %577 = sbr.rel (%p575) target = $region80
        $region79: #{tpu_custom_call.1} parent=71 // pred_region
          %578 = dma.done %s571, 128
        $region80: #{tpu_custom_call.1} parent=71 // pred_fallthru
          _
        %s579 = sand.u32 %s41, 1
        %s580 = scalar_lea.sflag [#allocation8], %s579
        %s581 = sand.u32 %s101, 1
        %s582 = smul.addr %s581, 8
        %s583 = scalar_lea.vmem [#allocation9], %s582
        // Predicated region
        $region81: #{tpu_custom_call.1} parent=71 // pred_check
          %p584 = pneg %p114
        $region82: #{tpu_custom_call.1} parent=71 // pred_check_branch
          %586 = sbr.rel (%p584) target = $region84
        $region83: #{tpu_custom_call.1} parent=71 // pred_region
          %587 = dma.done %s580, 128
        $region84: #{tpu_custom_call.1} parent=71 // pred_fallthru
          _
        %s588 = sand.u32 %s41, 1
        %s589 = scalar_lea.sflag [#allocation11], %s588
        %s590 = sand.u32 %s127, 1
        %s591 = smul.addr %s590, 8
        %s592 = scalar_lea.vmem [#allocation10], %s591
        // Predicated region
        $region85: #{tpu_custom_call.1} parent=71 // pred_check
          %p593 = pneg %p140
        $region86: #{tpu_custom_call.1} parent=71 // pred_check_branch
          %595 = sbr.rel (%p593) target = $region88
        $region87: #{tpu_custom_call.1} parent=71 // pred_region
          %596 = dma.done %s589, 128
        $region88: #{tpu_custom_call.1} parent=71 // pred_fallthru
          _
        %s597 = sand.u32 %s41, 1
        %s598 = scalar_lea.sflag [#allocation11], %s597
        %s599 = sand.u32 %s153, 1
        %s600 = smul.addr %s599, 16
        %s601 = scalar_lea.vmem [#allocation12], %s600
        // Predicated region
        $region89: #{tpu_custom_call.1} parent=71 // pred_check
          %p602 = pneg %p166
        $region90: #{tpu_custom_call.1} parent=71 // pred_check_branch
          %604 = sbr.rel (%p602) target = $region92
        $region91: #{tpu_custom_call.1} parent=71 // pred_region
          %605 = dma.done %s598, 256
        $region92: #{tpu_custom_call.1} parent=71 // pred_fallthru
          _
        // Predicated region
        $region93: #{tpu_custom_call.1} parent=71 // pred_check
          %p606 = pneg %p187
        $region94: #{tpu_custom_call.1} parent=71 // pred_check_branch
          %608 = sbr.rel (%p606) target = $region96
        $region95: #{tpu_custom_call.1} parent=71 // pred_region
          %609 = dma.done [#allocation14], 8192
        $region96: #{tpu_custom_call.1} parent=71 // pred_fallthru
          _
        // Predicated region
        $region97: #{tpu_custom_call.1} parent=71 // pred_check
          %p610 = pneg %p208
        $region98: #{tpu_custom_call.1} parent=71 // pred_check_branch
          %612 = sbr.rel (%p610) target = $region100
        $region99: #{tpu_custom_call.1} parent=71 // pred_region
          %613 = dma.done [#allocation14], 8192
        $region100: #{tpu_custom_call.1} parent=71 // pred_fallthru
          _
        // Predicated region
        $region101: #{tpu_custom_call.1} parent=71 // pred_check
          %p614 = pneg %p229
        $region102: #{tpu_custom_call.1} parent=71 // pred_check_branch
          %616 = sbr.rel (%p614) target = $region104
        $region103: #{tpu_custom_call.1} parent=71 // pred_region
          %617 = dma.done [#allocation17], 2048
        $region104: #{tpu_custom_call.1} parent=71 // pred_fallthru
          _
        // Predicated region
        $region105: #{tpu_custom_call.1} parent=71 // pred_check
          %p618 = pneg %p250
        $region106: #{tpu_custom_call.1} parent=71 // pred_check_branch
          %620 = sbr.rel (%p618) target = $region108
        $region107: #{tpu_custom_call.1} parent=71 // pred_region
          %621 = dma.done [#allocation17], 2048
        $region108: #{tpu_custom_call.1} parent=71 // pred_fallthru
          _
        // Predicated region
        $region109: #{tpu_custom_call.1} parent=71 // pred_check
          %p622 = pneg %p292
        $region110: #{tpu_custom_call.1} parent=71 // pred_check_branch
          %624 = sbr.rel (%p622) target = $region112
        $region111: #{tpu_custom_call.1} parent=71 // pred_region
          %625 = dma.done [#allocation6], 16
        $region112: #{tpu_custom_call.1} parent=71 // pred_fallthru
          _
        // Predicated region
        $region113: #{tpu_custom_call.1} parent=71 // pred_check
          %p626 = pneg %p313
        $region114: #{tpu_custom_call.1} parent=71 // pred_check_branch
          %628 = sbr.rel (%p626) target = $region116
        $region115: #{tpu_custom_call.1} parent=71 // pred_region
          %629 = dma.done [#allocation21], 16
        $region116: #{tpu_custom_call.1} parent=71 // pred_fallthru
          _
        %630 = sfence
        %s631 = sand.u32 %s49, 1
        %s632 = scalar_lea.sflag [#allocation4], %s631
        %s633 = sand.u32 %s49, 1
        %s634 = smul.addr %s633, 8
        %s635 = scalar_lea.vmem [#allocation3], %s634
        %p636 = pneg %p62
        %p637 = pneg %p59
        %s638 = sand.u32 %s41, 1
        %s639 = scalar_lea.sflag [#allocation8], %s638
        %s640 = sand.u32 %s75, 1
        %s641 = smul.addr %s640, 8
        %s642 = scalar_lea.vmem [#allocation7], %s641
        %p643 = pneg %p88
        %p644 = pneg %p85
        %s645 = sand.u32 %s41, 1
        %s646 = scalar_lea.sflag [#allocation8], %s645
        %s647 = sand.u32 %s101, 1
        %s648 = smul.addr %s647, 8
        %s649 = scalar_lea.vmem [#allocation9], %s648
        %p650 = pneg %p114
        %p651 = pneg %p111
        %s652 = sand.u32 %s41, 1
        %s653 = scalar_lea.sflag [#allocation11], %s652
        %s654 = sand.u32 %s127, 1
        %s655 = smul.addr %s654, 8
        %s656 = scalar_lea.vmem [#allocation10], %s655
        %p657 = pneg %p140
        %p658 = pneg %p137
        %s659 = sand.u32 %s41, 1
        %s660 = scalar_lea.sflag [#allocation11], %s659
        %s661 = sand.u32 %s153, 1
        %s662 = smul.addr %s661, 16
        %s663 = scalar_lea.vmem [#allocation12], %s662
        %p664 = pneg %p166
        %p665 = pneg %p163
        %p666 = pneg %p187
        %p667 = pneg %p184
        %p668 = pneg %p208
        %p669 = pneg %p205
        %p670 = pneg %p229
        %p671 = pneg %p226
        %p672 = pneg %p250
        %p673 = pneg %p247
        %p674 = pneg %p271
        %p675 = pneg %p268
        %p676 = pneg %p292
        %p677 = pneg %p289
        %p678 = pneg %p313
        %p679 = pneg %p310
        %p680 = pneg %p334
        %p681 = pneg %p331
        %p682 = pneg %p360
        %p683 = pneg %p357
        %s684 = sand.u32 %s347, 1
        %s685 = scalar_lea.sflag [#allocation5], %s684
        %s686 = sand.u32 %s347, 1
        %s687 = smul.addr %s686, 2
        %s688 = scalar_lea.vmem [#allocation22], %s687
        %s689 = sld [smem:[#allocation2]]
        %v690 = vstv %s689
        %v691 = vld [vmem:[%s565] sm:$0xff]
        %s692 = sld [smem:[#allocation19]]
        %v693 = vstv %s692
        %v694 = vmul.f32 %v693, %v691
        %s695 = sld [smem:[#allocation19 + $0x1]]
        %v696 = vstv %s695
        %v697 = vmul.f32 %v696, %v691
        %s698 = sld [smem:[#allocation19 + $0x2]]
        %v699 = vstv %s698
        %v700 = vmul.f32 %v699, %v691
        %s701 = sld [smem:[#allocation19 + $0x3]]
        %v702 = vstv %s701
        %v703 = vmul.f32 %v702, %v691
        %v705 = vrot.slane %v697, 5
        %v706 = vrot.slane %v705, 4
        %v708 = vadd.f32 %v694, %v706
        %v710 = vrot.slane %v700, 6
        %v711 = vrot.slane %v710, 4
        %v713 = vadd.f32 %v708, %v711
        %v715 = vrot.slane %v703, 7
        %v716 = vrot.slane %v715, 4
        %v718 = vadd.f32 %v713, %v716
        %s719 = sld [smem:[#allocation20]]
        %v720 = vstv %s719
        %v721 = vadd.f32 %v718, %v720
        %v722 = vsub.f32 0.0, %v721
        %v723 = vmul.f32 %v722, 1.442695
        %v724 = vpow.pop %v723
        %v725 = vadd.f32 %v724, 1.0
        %v726 = vrcp.pop %v725
        %v727 = vld [vmem:[#allocation13] sm:$0xff]
        %v728 = vld [vmem:[#allocation13 + $0x8] sm:$0xff]
        %v729 = vld [vmem:[#allocation13 + $0x10] sm:$0xff]
        %v730 = vld [vmem:[#allocation13 + $0x18] sm:$0xff]
        %v731 = vld [vmem:[#allocation13 + $0x20] sm:$0xff]
        %v732 = vld [vmem:[#allocation13 + $0x28] sm:$0xff]
        %v733 = vld [vmem:[#allocation13 + $0x30] sm:$0xff]
        %v734 = vld [vmem:[#allocation13 + $0x38] sm:$0xff]
        %v735 = vld [vmem:[#allocation13 + $0x40] sm:$0xff]
        %v736 = vld [vmem:[#allocation13 + $0x48] sm:$0xff]
        %v737 = vld [vmem:[#allocation13 + $0x50] sm:$0xff]
        %v738 = vld [vmem:[#allocation13 + $0x58] sm:$0xff]
        %v739 = vld [vmem:[#allocation13 + $0x60] sm:$0xff]
        %v740 = vld [vmem:[#allocation13 + $0x68] sm:$0xff]
        %v741 = vld [vmem:[#allocation13 + $0x70] sm:$0xff]
        %v742 = vld [vmem:[#allocation13 + $0x78] sm:$0xff]
        %v743 = vld [vmem:[#allocation13 + $0x80] sm:$0xff]
        %v744 = vld [vmem:[#allocation13 + $0x88] sm:$0xff]
        %v745 = vld [vmem:[#allocation13 + $0x90] sm:$0xff]
        %v746 = vld [vmem:[#allocation13 + $0x98] sm:$0xff]
        %v747 = vld [vmem:[#allocation13 + $0xa0] sm:$0xff]
        %v748 = vld [vmem:[#allocation13 + $0xa8] sm:$0xff]
        %v749 = vld [vmem:[#allocation13 + $0xb0] sm:$0xff]
        %v750 = vld [vmem:[#allocation13 + $0xb8] sm:$0xff]
        %v751 = vld [vmem:[#allocation13 + $0xc0] sm:$0xff]
        %v752 = vld [vmem:[#allocation13 + $0xc8] sm:$0xff]
        %v753 = vld [vmem:[#allocation13 + $0xd0] sm:$0xff]
        %v754 = vld [vmem:[#allocation13 + $0xd8] sm:$0xff]
        %v755 = vld [vmem:[#allocation13 + $0xe0] sm:$0xff]
        %v756 = vld [vmem:[#allocation13 + $0xe8] sm:$0xff]
        %v757 = vld [vmem:[#allocation13 + $0xf0] sm:$0xff]
        %v758 = vld [vmem:[#allocation13 + $0xf8] sm:$0xff]
        %v759 = vld [vmem:[#allocation13 + $0x100] sm:$0xff]
        %v760 = vld [vmem:[#allocation13 + $0x108] sm:$0xff]
        %v761 = vld [vmem:[#allocation13 + $0x110] sm:$0xff]
        %v762 = vld [vmem:[#allocation13 + $0x118] sm:$0xff]
        %v763 = vld [vmem:[#allocation13 + $0x120] sm:$0xff]
        %v764 = vld [vmem:[#allocation13 + $0x128] sm:$0xff]
        %v765 = vld [vmem:[#allocation13 + $0x130] sm:$0xff]
        %v766 = vld [vmem:[#allocation13 + $0x138] sm:$0xff]
        %v767 = vld [vmem:[#allocation13 + $0x140] sm:$0xff]
        %v768 = vld [vmem:[#allocation13 + $0x148] sm:$0xff]
        %v769 = vld [vmem:[#allocation13 + $0x150] sm:$0xff]
        %v770 = vld [vmem:[#allocation13 + $0x158] sm:$0xff]
        %v771 = vld [vmem:[#allocation13 + $0x160] sm:$0xff]
        %v772 = vld [vmem:[#allocation13 + $0x168] sm:$0xff]
        %v773 = vld [vmem:[#allocation13 + $0x170] sm:$0xff]
        %v774 = vld [vmem:[#allocation13 + $0x178] sm:$0xff]
        %v775 = vld [vmem:[#allocation13 + $0x180] sm:$0xff]
        %v776 = vld [vmem:[#allocation13 + $0x188] sm:$0xff]
        %v777 = vld [vmem:[#allocation13 + $0x190] sm:$0xff]
        %v778 = vld [vmem:[#allocation13 + $0x198] sm:$0xff]
        %v779 = vld [vmem:[#allocation13 + $0x1a0] sm:$0xff]
        %v780 = vld [vmem:[#allocation13 + $0x1a8] sm:$0xff]
        %v781 = vld [vmem:[#allocation13 + $0x1b0] sm:$0xff]
        %v782 = vld [vmem:[#allocation13 + $0x1b8] sm:$0xff]
        %v783 = vld [vmem:[#allocation13 + $0x1c0] sm:$0xff]
        %v784 = vld [vmem:[#allocation13 + $0x1c8] sm:$0xff]
        %v785 = vld [vmem:[#allocation13 + $0x1d0] sm:$0xff]
        %v786 = vld [vmem:[#allocation13 + $0x1d8] sm:$0xff]
        %v787 = vld [vmem:[#allocation13 + $0x1e0] sm:$0xff]
        %v788 = vld [vmem:[#allocation13 + $0x1e8] sm:$0xff]
        %v789 = vld [vmem:[#allocation13 + $0x1f0] sm:$0xff]
        %v790 = vld [vmem:[#allocation13 + $0x1f8] sm:$0xff]
        %v792 = vlaneseq
        %v793 = vshrl.u32 %v792, 7
        %v794 = vsub.s32 0, %v793
        %v795 = vrot.slane %v726, %v794
        %v796 = vlaneseq
        %v797 = vshrl.u32 %v796, 7
        %v798 = vsub.s32 4, %v797
        %v799 = vrot.slane %v726, %v798
        %802 = vmatprep.subr.mxu0 %v728
        %803 = vmatpush1.msra.mxu0 %v727
        %804 = vmatprep.subr.mxu0 %v730
        %805 = vmatpush1.msra.mxu0 %v729
        %806 = vmatprep.subr.mxu0 %v732
        %807 = vmatpush1.msra.mxu0 %v731
        %808 = vmatprep.subr.mxu0 %v734
        %809 = vmatpush1.msra.mxu0 %v733
        %810 = vmatprep.subr.mxu0 %v736
        %811 = vmatpush1.msra.mxu0 %v735
        %812 = vmatprep.subr.mxu0 %v738
        %813 = vmatpush1.msra.mxu0 %v737
        %814 = vmatprep.subr.mxu0 %v740
        %815 = vmatpush1.msra.mxu0 %v739
        %816 = vmatprep.subr.mxu0 %v742
        %817 = vmatpush1.msra.mxu0 %v741
        %818 = vmatprep.subr.mxu0 %v744
        %819 = vmatpush1.msra.mxu0 %v743
        %820 = vmatprep.subr.mxu0 %v746
        %821 = vmatpush1.msra.mxu0 %v745
        %822 = vmatprep.subr.mxu0 %v748
        %823 = vmatpush1.msra.mxu0 %v747
        %824 = vmatprep.subr.mxu0 %v750
        %825 = vmatpush1.msra.mxu0 %v749
        %826 = vmatprep.subr.mxu0 %v752
        %827 = vmatpush1.msra.mxu0 %v751
        %828 = vmatprep.subr.mxu0 %v754
        %829 = vmatpush1.msra.mxu0 %v753
        %830 = vmatprep.subr.mxu0 %v756
        %831 = vmatpush1.msra.mxu0 %v755
        %832 = vmatprep.subr.mxu0 %v758
        %833 = vmatpush1.msra.mxu0 %v757
        %834 = vmatprep.subr.mxu0 %v760
        %835 = vmatpush1.msra.mxu0 %v759
        %836 = vmatprep.subr.mxu0 %v762
        %837 = vmatpush1.msra.mxu0 %v761
        %838 = vmatprep.subr.mxu0 %v764
        %839 = vmatpush1.msra.mxu0 %v763
        %840 = vmatprep.subr.mxu0 %v766
        %841 = vmatpush1.msra.mxu0 %v765
        %842 = vmatprep.subr.mxu0 %v768
        %843 = vmatpush1.msra.mxu0 %v767
        %844 = vmatprep.subr.mxu0 %v770
        %845 = vmatpush1.msra.mxu0 %v769
        %846 = vmatprep.subr.mxu0 %v772
        %847 = vmatpush1.msra.mxu0 %v771
        %848 = vmatprep.subr.mxu0 %v774
        %849 = vmatpush1.msra.mxu0 %v773
        %850 = vmatprep.subr.mxu0 %v776
        %851 = vmatpush1.msra.mxu0 %v775
        %852 = vmatprep.subr.mxu0 %v778
        %853 = vmatpush1.msra.mxu0 %v777
        %854 = vmatprep.subr.mxu0 %v780
        %855 = vmatpush1.msra.mxu0 %v779
        %856 = vmatprep.subr.mxu0 %v782
        %857 = vmatpush1.msra.mxu0 %v781
        %858 = vmatprep.subr.mxu0 %v784
        %859 = vmatpush1.msra.mxu0 %v783
        %860 = vmatprep.subr.mxu0 %v786
        %861 = vmatpush1.msra.mxu0 %v785
        %862 = vmatprep.subr.mxu0 %v788
        %863 = vmatpush1.msra.mxu0 %v787
        %864 = vmatprep.subr.mxu0 %v790
        %865 = vmatpush1.msra.mxu0 %v789
        %866 = vmatprep.mubr.f32.mxu0 %v799
        %867 = vmatmul.mubr.f32.gmra.mrb[0].mxu0 %v795
        %v868 = vpop.f32.mrb[0].mxu0
        %v869 = vadd.f32 0.0, %v868
        %v870 = vpop.f32.mrb[0].mxu0
        %v871 = vadd.f32 0.0, %v870
        %872 = vdwg.mxu0
        %v873 = vadd.f32 %v690, %v869
        %v874 = vadd.f32 %v690, %v871
        %v875 = vld [vmem:[%s574] sm:$0xff]
        %s876 = sld [smem:[#allocation19 + $0x4]]
        %v877 = vstv %s876
        %v878 = vmul.f32 %v877, %v875
        %s879 = sld [smem:[#allocation19 + $0x5]]
        %v880 = vstv %s879
        %v881 = vmul.f32 %v880, %v875
        %s882 = sld [smem:[#allocation19 + $0x6]]
        %v883 = vstv %s882
        %v884 = vmul.f32 %v883, %v875
        %s885 = sld [smem:[#allocation19 + $0x7]]
        %v886 = vstv %s885
        %v887 = vmul.f32 %v886, %v875
        %v889 = vrot.slane %v881, 5
        %v890 = vrot.slane %v889, 4
        %v892 = vadd.f32 %v878, %v890
        %v894 = vrot.slane %v884, 6
        %v895 = vrot.slane %v894, 4
        %v897 = vadd.f32 %v892, %v895
        %v899 = vrot.slane %v887, 7
        %v900 = vrot.slane %v899, 4
        %v902 = vadd.f32 %v897, %v900
        %s903 = sld [smem:[#allocation20 + $0x1]]
        %v904 = vstv %s903
        %v905 = vadd.f32 %v902, %v904
        %v906 = vsub.f32 0.0, %v905
        %v907 = vmul.f32 %v906, 1.442695
        %v908 = vpow.pop %v907
        %v909 = vadd.f32 %v908, 1.0
        %v910 = vrcp.pop %v909
        %v911 = vld [vmem:[#allocation15] sm:$0xff]
        %v912 = vld [vmem:[#allocation15 + $0x8] sm:$0xff]
        %v913 = vld [vmem:[#allocation15 + $0x10] sm:$0xff]
        %v914 = vld [vmem:[#allocation15 + $0x18] sm:$0xff]
        %v915 = vld [vmem:[#allocation15 + $0x20] sm:$0xff]
        %v916 = vld [vmem:[#allocation15 + $0x28] sm:$0xff]
        %v917 = vld [vmem:[#allocation15 + $0x30] sm:$0xff]
        %v918 = vld [vmem:[#allocation15 + $0x38] sm:$0xff]
        %v919 = vld [vmem:[#allocation15 + $0x40] sm:$0xff]
        %v920 = vld [vmem:[#allocation15 + $0x48] sm:$0xff]
        %v921 = vld [vmem:[#allocation15 + $0x50] sm:$0xff]
        %v922 = vld [vmem:[#allocation15 + $0x58] sm:$0xff]
        %v923 = vld [vmem:[#allocation15 + $0x60] sm:$0xff]
        %v924 = vld [vmem:[#allocation15 + $0x68] sm:$0xff]
        %v925 = vld [vmem:[#allocation15 + $0x70] sm:$0xff]
        %v926 = vld [vmem:[#allocation15 + $0x78] sm:$0xff]
        %v927 = vld [vmem:[#allocation15 + $0x80] sm:$0xff]
        %v928 = vld [vmem:[#allocation15 + $0x88] sm:$0xff]
        %v929 = vld [vmem:[#allocation15 + $0x90] sm:$0xff]
        %v930 = vld [vmem:[#allocation15 + $0x98] sm:$0xff]
        %v931 = vld [vmem:[#allocation15 + $0xa0] sm:$0xff]
        %v932 = vld [vmem:[#allocation15 + $0xa8] sm:$0xff]
        %v933 = vld [vmem:[#allocation15 + $0xb0] sm:$0xff]
        %v934 = vld [vmem:[#allocation15 + $0xb8] sm:$0xff]
        %v935 = vld [vmem:[#allocation15 + $0xc0] sm:$0xff]
        %v936 = vld [vmem:[#allocation15 + $0xc8] sm:$0xff]
        %v937 = vld [vmem:[#allocation15 + $0xd0] sm:$0xff]
        %v938 = vld [vmem:[#allocation15 + $0xd8] sm:$0xff]
        %v939 = vld [vmem:[#allocation15 + $0xe0] sm:$0xff]
        %v940 = vld [vmem:[#allocation15 + $0xe8] sm:$0xff]
        %v941 = vld [vmem:[#allocation15 + $0xf0] sm:$0xff]
        %v942 = vld [vmem:[#allocation15 + $0xf8] sm:$0xff]
        %v943 = vld [vmem:[#allocation15 + $0x100] sm:$0xff]
        %v944 = vld [vmem:[#allocation15 + $0x108] sm:$0xff]
        %v945 = vld [vmem:[#allocation15 + $0x110] sm:$0xff]
        %v946 = vld [vmem:[#allocation15 + $0x118] sm:$0xff]
        %v947 = vld [vmem:[#allocation15 + $0x120] sm:$0xff]
        %v948 = vld [vmem:[#allocation15 + $0x128] sm:$0xff]
        %v949 = vld [vmem:[#allocation15 + $0x130] sm:$0xff]
        %v950 = vld [vmem:[#allocation15 + $0x138] sm:$0xff]
        %v951 = vld [vmem:[#allocation15 + $0x140] sm:$0xff]
        %v952 = vld [vmem:[#allocation15 + $0x148] sm:$0xff]
        %v953 = vld [vmem:[#allocation15 + $0x150] sm:$0xff]
        %v954 = vld [vmem:[#allocation15 + $0x158] sm:$0xff]
        %v955 = vld [vmem:[#allocation15 + $0x160] sm:$0xff]
        %v956 = vld [vmem:[#allocation15 + $0x168] sm:$0xff]
        %v957 = vld [vmem:[#allocation15 + $0x170] sm:$0xff]
        %v958 = vld [vmem:[#allocation15 + $0x178] sm:$0xff]
        %v959 = vld [vmem:[#allocation15 + $0x180] sm:$0xff]
        %v960 = vld [vmem:[#allocation15 + $0x188] sm:$0xff]
        %v961 = vld [vmem:[#allocation15 + $0x190] sm:$0xff]
        %v962 = vld [vmem:[#allocation15 + $0x198] sm:$0xff]
        %v963 = vld [vmem:[#allocation15 + $0x1a0] sm:$0xff]
        %v964 = vld [vmem:[#allocation15 + $0x1a8] sm:$0xff]
        %v965 = vld [vmem:[#allocation15 + $0x1b0] sm:$0xff]
        %v966 = vld [vmem:[#allocation15 + $0x1b8] sm:$0xff]
        %v967 = vld [vmem:[#allocation15 + $0x1c0] sm:$0xff]
        %v968 = vld [vmem:[#allocation15 + $0x1c8] sm:$0xff]
        %v969 = vld [vmem:[#allocation15 + $0x1d0] sm:$0xff]
        %v970 = vld [vmem:[#allocation15 + $0x1d8] sm:$0xff]
        %v971 = vld [vmem:[#allocation15 + $0x1e0] sm:$0xff]
        %v972 = vld [vmem:[#allocation15 + $0x1e8] sm:$0xff]
        %v973 = vld [vmem:[#allocation15 + $0x1f0] sm:$0xff]
        %v974 = vld [vmem:[#allocation15 + $0x1f8] sm:$0xff]
        %v976 = vlaneseq
        %v977 = vshrl.u32 %v976, 7
        %v978 = vsub.s32 0, %v977
        %v979 = vrot.slane %v910, %v978
        %v980 = vlaneseq
        %v981 = vshrl.u32 %v980, 7
        %v982 = vsub.s32 4, %v981
        %v983 = vrot.slane %v910, %v982
        %986 = vmatprep.subr.mxu0 %v912
        %987 = vmatpush1.msra.mxu0 %v911
        %988 = vmatprep.subr.mxu0 %v914
        %989 = vmatpush1.msra.mxu0 %v913
        %990 = vmatprep.subr.mxu0 %v916
        %991 = vmatpush1.msra.mxu0 %v915
        %992 = vmatprep.subr.mxu0 %v918
        %993 = vmatpush1.msra.mxu0 %v917
        %994 = vmatprep.subr.mxu0 %v920
        %995 = vmatpush1.msra.mxu0 %v919
        %996 = vmatprep.subr.mxu0 %v922
        %997 = vmatpush1.msra.mxu0 %v921
        %998 = vmatprep.subr.mxu0 %v924
        %999 = vmatpush1.msra.mxu0 %v923
        %1000 = vmatprep.subr.mxu0 %v926
        %1001 = vmatpush1.msra.mxu0 %v925
        %1002 = vmatprep.subr.mxu0 %v928
        %1003 = vmatpush1.msra.mxu0 %v927
        %1004 = vmatprep.subr.mxu0 %v930
        %1005 = vmatpush1.msra.mxu0 %v929
        %1006 = vmatprep.subr.mxu0 %v932
        %1007 = vmatpush1.msra.mxu0 %v931
        %1008 = vmatprep.subr.mxu0 %v934
        %1009 = vmatpush1.msra.mxu0 %v933
        %1010 = vmatprep.subr.mxu0 %v936
        %1011 = vmatpush1.msra.mxu0 %v935
        %1012 = vmatprep.subr.mxu0 %v938
        %1013 = vmatpush1.msra.mxu0 %v937
        %1014 = vmatprep.subr.mxu0 %v940
        %1015 = vmatpush1.msra.mxu0 %v939
        %1016 = vmatprep.subr.mxu0 %v942
        %1017 = vmatpush1.msra.mxu0 %v941
        %1018 = vmatprep.subr.mxu0 %v944
        %1019 = vmatpush1.msra.mxu0 %v943
        %1020 = vmatprep.subr.mxu0 %v946
        %1021 = vmatpush1.msra.mxu0 %v945
        %1022 = vmatprep.subr.mxu0 %v948
        %1023 = vmatpush1.msra.mxu0 %v947
        %1024 = vmatprep.subr.mxu0 %v950
        %1025 = vmatpush1.msra.mxu0 %v949
        %1026 = vmatprep.subr.mxu0 %v952
        %1027 = vmatpush1.msra.mxu0 %v951
        %1028 = vmatprep.subr.mxu0 %v954
        %1029 = vmatpush1.msra.mxu0 %v953
        %1030 = vmatprep.subr.mxu0 %v956
        %1031 = vmatpush1.msra.mxu0 %v955
        %1032 = vmatprep.subr.mxu0 %v958
        %1033 = vmatpush1.msra.mxu0 %v957
        %1034 = vmatprep.subr.mxu0 %v960
        %1035 = vmatpush1.msra.mxu0 %v959
        %1036 = vmatprep.subr.mxu0 %v962
        %1037 = vmatpush1.msra.mxu0 %v961
        %1038 = vmatprep.subr.mxu0 %v964
        %1039 = vmatpush1.msra.mxu0 %v963
        %1040 = vmatprep.subr.mxu0 %v966
        %1041 = vmatpush1.msra.mxu0 %v965
        %1042 = vmatprep.subr.mxu0 %v968
        %1043 = vmatpush1.msra.mxu0 %v967
        %1044 = vmatprep.subr.mxu0 %v970
        %1045 = vmatpush1.msra.mxu0 %v969
        %1046 = vmatprep.subr.mxu0 %v972
        %1047 = vmatpush1.msra.mxu0 %v971
        %1048 = vmatprep.subr.mxu0 %v974
        %1049 = vmatpush1.msra.mxu0 %v973
        %1050 = vmatprep.mubr.f32.mxu0 %v983
        %1051 = vmatmul.mubr.f32.gmra.mrb[0].mxu0 %v979
        %v1052 = vpop.f32.mrb[0].mxu0
        %v1053 = vadd.f32 0.0, %v1052
        %v1054 = vpop.f32.mrb[0].mxu0
        %v1055 = vadd.f32 0.0, %v1054
        %1056 = vdwg.mxu0
        %v1057 = vadd.f32 %v873, %v1053
        %v1058 = vadd.f32 %v874, %v1055
        %v1059 = vld [vmem:[%s583] sm:$0xff]
        %s1060 = sld [smem:[#allocation19 + $0x8]]
        %v1061 = vstv %s1060
        %v1062 = vmul.f32 %v1061, %v1059
        %s1063 = sld [smem:[#allocation19 + $0x9]]
        %v1064 = vstv %s1063
        %v1065 = vmul.f32 %v1064, %v1059
        %s1066 = sld [smem:[#allocation19 + $0xa]]
        %v1067 = vstv %s1066
        %v1068 = vmul.f32 %v1067, %v1059
        %s1069 = sld [smem:[#allocation19 + $0xb]]
        %v1070 = vstv %s1069
        %v1071 = vmul.f32 %v1070, %v1059
        %s1072 = sld [smem:[#allocation19 + $0xc]]
        %v1073 = vstv %s1072
        %v1074 = vmul.f32 %v1073, %v1059
        %v1076 = vrot.slane %v1074, 4
        %v1078 = vadd.f32 %v1062, %v1076
        %s1079 = sld [smem:[#allocation19 + $0xd]]
        %v1080 = vstv %s1079
        %v1081 = vmul.f32 %v1080, %v1059
        %v1083 = vrot.slane %v1081, 4
        %v1085 = vadd.f32 %v1065, %v1083
        %s1086 = sld [smem:[#allocation19 + $0xe]]
        %v1087 = vstv %s1086
        %v1088 = vmul.f32 %v1087, %v1059
        %v1090 = vrot.slane %v1088, 4
        %v1092 = vadd.f32 %v1068, %v1090
        %s1093 = sld [smem:[#allocation19 + $0xf]]
        %v1094 = vstv %s1093
        %v1095 = vmul.f32 %v1094, %v1059
        %v1097 = vrot.slane %v1095, 4
        %v1099 = vadd.f32 %v1071, %v1097
        %v1101 = vrot.slane %v1085, 1
        %v1103 = vadd.f32 %v1078, %v1101
        %v1105 = vrot.slane %v1092, 2
        %v1107 = vadd.f32 %v1103, %v1105
        %v1109 = vrot.slane %v1099, 3
        %v1111 = vadd.f32 %v1107, %v1109
        %s1112 = sld [smem:[#allocation20 + $0x2]]
        %v1113 = vstv %s1112
        %v1114 = vadd.f32 %v1111, %v1113
        %v1115 = vsub.f32 0.0, %v1114
        %v1116 = vmul.f32 %v1115, 1.442695
        %v1117 = vpow.pop %v1116
        %v1118 = vadd.f32 %v1117, 1.0
        %v1119 = vrcp.pop %v1118
        %v1120 = vld [vmem:[#allocation16] sm:$0xff]
        %v1121 = vld [vmem:[#allocation16 + $0x8] sm:$0xff]
        %v1122 = vld [vmem:[#allocation16 + $0x10] sm:$0xff]
        %v1123 = vld [vmem:[#allocation16 + $0x18] sm:$0xff]
        %v1124 = vld [vmem:[#allocation16 + $0x20] sm:$0xff]
        %v1125 = vld [vmem:[#allocation16 + $0x28] sm:$0xff]
        %v1126 = vld [vmem:[#allocation16 + $0x30] sm:$0xff]
        %v1127 = vld [vmem:[#allocation16 + $0x38] sm:$0xff]
        %v1128 = vld [vmem:[#allocation16 + $0x40] sm:$0xff]
        %v1129 = vld [vmem:[#allocation16 + $0x48] sm:$0xff]
        %v1130 = vld [vmem:[#allocation16 + $0x50] sm:$0xff]
        %v1131 = vld [vmem:[#allocation16 + $0x58] sm:$0xff]
        %v1132 = vld [vmem:[#allocation16 + $0x60] sm:$0xff]
        %v1133 = vld [vmem:[#allocation16 + $0x68] sm:$0xff]
        %v1134 = vld [vmem:[#allocation16 + $0x70] sm:$0xff]
        %v1135 = vld [vmem:[#allocation16 + $0x78] sm:$0xff]
        %vm1136 = vcmask 523264
        %v1138 = vsel %vm1136, %v1119, 0
        %1140 = vmatprep.subr.mxu0 %v1121
        %1141 = vmatpush1.msra.mxu0 %v1120
        %1142 = vmatprep.subr.mxu0 %v1123
        %1143 = vmatpush1.msra.mxu0 %v1122
        %1144 = vmatprep.subr.mxu0 %v1125
        %1145 = vmatpush1.msra.mxu0 %v1124
        %1146 = vmatprep.subr.mxu0 %v1127
        %1147 = vmatpush1.msra.mxu0 %v1126
        %1148 = vmatprep.subr.mxu0 %v1129
        %1149 = vmatpush1.msra.mxu0 %v1128
        %1150 = vmatprep.subr.mxu0 %v1131
        %1151 = vmatpush1.msra.mxu0 %v1130
        %1152 = vmatprep.subr.mxu0 %v1133
        %1153 = vmatpush1.msra.mxu0 %v1132
        %1154 = vmatprep.subr.mxu0 %v1135
        %1155 = vmatpush1.msra.mxu0 %v1134
        %1156 = vmatprep.subr.mxu0 0.0
        %1157 = vmatpush1.msra.mxu0 0.0
        %1158 = vmatprep.subr.mxu0 0.0
        %1159 = vmatpush1.msra.mxu0 0.0
        %1160 = vmatprep.subr.mxu0 0.0
        %1161 = vmatpush1.msra.mxu0 0.0
        %1162 = vmatprep.subr.mxu0 0.0
        %1163 = vmatpush1.msra.mxu0 0.0
        %1164 = vmatprep.subr.mxu0 0.0
        %1165 = vmatpush1.msra.mxu0 0.0
        %1166 = vmatprep.subr.mxu0 0.0
        %1167 = vmatpush1.msra.mxu0 0.0
        %1168 = vmatprep.subr.mxu0 0.0
        %1169 = vmatpush1.msra.mxu0 0.0
        %1170 = vmatprep.subr.mxu0 0.0
        %1171 = vmatpush1.msra.mxu0 0.0
        %1172 = vmatprep.subr.mxu0 0.0
        %1173 = vmatpush1.msra.mxu0 0.0
        %1174 = vmatprep.subr.mxu0 0.0
        %1175 = vmatpush1.msra.mxu0 0.0
        %1176 = vmatprep.subr.mxu0 0.0
        %1177 = vmatpush1.msra.mxu0 0.0
        %1178 = vmatprep.subr.mxu0 0.0
        %1179 = vmatpush1.msra.mxu0 0.0
        %1180 = vmatprep.subr.mxu0 0.0
        %1181 = vmatpush1.msra.mxu0 0.0
        %1182 = vmatprep.subr.mxu0 0.0
        %1183 = vmatpush1.msra.mxu0 0.0
        %1184 = vmatprep.subr.mxu0 0.0
        %1185 = vmatpush1.msra.mxu0 0.0
        %1186 = vmatprep.subr.mxu0 0.0
        %1187 = vmatpush1.msra.mxu0 0.0
        %1188 = vmatprep.subr.mxu0 0.0
        %1189 = vmatpush1.msra.mxu0 0.0
        %1190 = vmatprep.subr.mxu0 0.0
        %1191 = vmatpush1.msra.mxu0 0.0
        %1192 = vmatprep.subr.mxu0 0.0
        %1193 = vmatpush1.msra.mxu0 0.0
        %1194 = vmatprep.subr.mxu0 0.0
        %1195 = vmatpush1.msra.mxu0 0.0
        %1196 = vmatprep.subr.mxu0 0.0
        %1197 = vmatpush1.msra.mxu0 0.0
        %1198 = vmatprep.subr.mxu0 0.0
        %1199 = vmatpush1.msra.mxu0 0.0
        %1200 = vmatprep.subr.mxu0 0.0
        %1201 = vmatpush1.msra.mxu0 0.0
        %1202 = vmatprep.subr.mxu0 0.0
        %1203 = vmatpush1.msra.mxu0 0.0
        %1204 = vmatprep.mubr.f32.mxu0 0.0
        %1205 = vmatmul.mubr.f32.gmra.mrb[0].mxu0 %v1138
        %v1206 = vpop.f32.mrb[0].mxu0
        %v1207 = vadd.f32 0.0, %v1206
        %v1208 = vpop.f32.mrb[0].mxu0
        %v1209 = vadd.f32 0.0, %v1208
        %1210 = vdwg.mxu0
        %v1211 = vadd.f32 %v1057, %v1207
        %v1212 = vadd.f32 %v1058, %v1209
        %v1213 = vld [vmem:[%s592] sm:$0xff]
        %s1214 = sld [smem:[#allocation19 + $0x10]]
        %v1215 = vstv %s1214
        %v1216 = vmul.f32 %v1215, %v1213
        %s1217 = sld [smem:[#allocation19 + $0x11]]
        %v1218 = vstv %s1217
        %v1219 = vmul.f32 %v1218, %v1213
        %s1220 = sld [smem:[#allocation19 + $0x12]]
        %v1221 = vstv %s1220
        %v1222 = vmul.f32 %v1221, %v1213
        %s1223 = sld [smem:[#allocation19 + $0x13]]
        %v1224 = vstv %s1223
        %v1225 = vmul.f32 %v1224, %v1213
        %s1226 = sld [smem:[#allocation19 + $0x14]]
        %v1227 = vstv %s1226
        %v1228 = vmul.f32 %v1227, %v1213
        %v1230 = vrot.slane %v1228, 4
        %v1232 = vadd.f32 %v1216, %v1230
        %s1233 = sld [smem:[#allocation19 + $0x15]]
        %v1234 = vstv %s1233
        %v1235 = vmul.f32 %v1234, %v1213
        %v1237 = vrot.slane %v1235, 4
        %v1239 = vadd.f32 %v1219, %v1237
        %s1240 = sld [smem:[#allocation19 + $0x16]]
        %v1241 = vstv %s1240
        %v1242 = vmul.f32 %v1241, %v1213
        %v1244 = vrot.slane %v1242, 4
        %v1246 = vadd.f32 %v1222, %v1244
        %s1247 = sld [smem:[#allocation19 + $0x17]]
        %v1248 = vstv %s1247
        %v1249 = vmul.f32 %v1248, %v1213
        %v1251 = vrot.slane %v1249, 4
        %v1253 = vadd.f32 %v1225, %v1251
        %v1255 = vrot.slane %v1239, 1
        %v1257 = vadd.f32 %v1232, %v1255
        %v1259 = vrot.slane %v1246, 2
        %v1261 = vadd.f32 %v1257, %v1259
        %v1263 = vrot.slane %v1253, 3
        %v1265 = vadd.f32 %v1261, %v1263
        %s1266 = sld [smem:[#allocation20 + $0x3]]
        %v1267 = vstv %s1266
        %v1268 = vadd.f32 %v1265, %v1267
        %v1269 = vsub.f32 0.0, %v1268
        %v1270 = vmul.f32 %v1269, 1.442695
        %v1271 = vpow.pop %v1270
        %v1272 = vadd.f32 %v1271, 1.0
        %v1273 = vrcp.pop %v1272
        %v1274 = vld [vmem:[#allocation18] sm:$0xff]
        %v1275 = vld [vmem:[#allocation18 + $0x8] sm:$0xff]
        %v1276 = vld [vmem:[#allocation18 + $0x10] sm:$0xff]
        %v1277 = vld [vmem:[#allocation18 + $0x18] sm:$0xff]
        %v1278 = vld [vmem:[#allocation18 + $0x20] sm:$0xff]
        %v1279 = vld [vmem:[#allocation18 + $0x28] sm:$0xff]
        %v1280 = vld [vmem:[#allocation18 + $0x30] sm:$0xff]
        %v1281 = vld [vmem:[#allocation18 + $0x38] sm:$0xff]
        %v1282 = vld [vmem:[#allocation18 + $0x40] sm:$0xff]
        %v1283 = vld [vmem:[#allocation18 + $0x48] sm:$0xff]
        %v1284 = vld [vmem:[#allocation18 + $0x50] sm:$0xff]
        %v1285 = vld [vmem:[#allocation18 + $0x58] sm:$0xff]
        %v1286 = vld [vmem:[#allocation18 + $0x60] sm:$0xff]
        %v1287 = vld [vmem:[#allocation18 + $0x68] sm:$0xff]
        %v1288 = vld [vmem:[#allocation18 + $0x70] sm:$0xff]
        %v1289 = vld [vmem:[#allocation18 + $0x78] sm:$0xff]
        %v1291 = vsel %vm1136, %v1273, 0
        %1293 = vmatprep.subr.mxu0 %v1275
        %1294 = vmatpush1.msra.mxu0 %v1274
        %1295 = vmatprep.subr.mxu0 %v1277
        %1296 = vmatpush1.msra.mxu0 %v1276
        %1297 = vmatprep.subr.mxu0 %v1279
        %1298 = vmatpush1.msra.mxu0 %v1278
        %1299 = vmatprep.subr.mxu0 %v1281
        %1300 = vmatpush1.msra.mxu0 %v1280
        %1301 = vmatprep.subr.mxu0 %v1283
        %1302 = vmatpush1.msra.mxu0 %v1282
        %1303 = vmatprep.subr.mxu0 %v1285
        %1304 = vmatpush1.msra.mxu0 %v1284
        %1305 = vmatprep.subr.mxu0 %v1287
        %1306 = vmatpush1.msra.mxu0 %v1286
        %1307 = vmatprep.subr.mxu0 %v1289
        %1308 = vmatpush1.msra.mxu0 %v1288
        %1309 = vmatprep.subr.mxu0 0.0
        %1310 = vmatpush1.msra.mxu0 0.0
        %1311 = vmatprep.subr.mxu0 0.0
        %1312 = vmatpush1.msra.mxu0 0.0
        %1313 = vmatprep.subr.mxu0 0.0
        %1314 = vmatpush1.msra.mxu0 0.0
        %1315 = vmatprep.subr.mxu0 0.0
        %1316 = vmatpush1.msra.mxu0 0.0
        %1317 = vmatprep.subr.mxu0 0.0
        %1318 = vmatpush1.msra.mxu0 0.0
        %1319 = vmatprep.subr.mxu0 0.0
        %1320 = vmatpush1.msra.mxu0 0.0
        %1321 = vmatprep.subr.mxu0 0.0
        %1322 = vmatpush1.msra.mxu0 0.0
        %1323 = vmatprep.subr.mxu0 0.0
        %1324 = vmatpush1.msra.mxu0 0.0
        %1325 = vmatprep.subr.mxu0 0.0
        %1326 = vmatpush1.msra.mxu0 0.0
        %1327 = vmatprep.subr.mxu0 0.0
        %1328 = vmatpush1.msra.mxu0 0.0
        %1329 = vmatprep.subr.mxu0 0.0
        %1330 = vmatpush1.msra.mxu0 0.0
        %1331 = vmatprep.subr.mxu0 0.0
        %1332 = vmatpush1.msra.mxu0 0.0
        %1333 = vmatprep.subr.mxu0 0.0
        %1334 = vmatpush1.msra.mxu0 0.0
        %1335 = vmatprep.subr.mxu0 0.0
        %1336 = vmatpush1.msra.mxu0 0.0
        %1337 = vmatprep.subr.mxu0 0.0
        %1338 = vmatpush1.msra.mxu0 0.0
        %1339 = vmatprep.subr.mxu0 0.0
        %1340 = vmatpush1.msra.mxu0 0.0
        %1341 = vmatprep.subr.mxu0 0.0
        %1342 = vmatpush1.msra.mxu0 0.0
        %1343 = vmatprep.subr.mxu0 0.0
        %1344 = vmatpush1.msra.mxu0 0.0
        %1345 = vmatprep.subr.mxu0 0.0
        %1346 = vmatpush1.msra.mxu0 0.0
        %1347 = vmatprep.subr.mxu0 0.0
        %1348 = vmatpush1.msra.mxu0 0.0
        %1349 = vmatprep.subr.mxu0 0.0
        %1350 = vmatpush1.msra.mxu0 0.0
        %1351 = vmatprep.subr.mxu0 0.0
        %1352 = vmatpush1.msra.mxu0 0.0
        %1353 = vmatprep.subr.mxu0 0.0
        %1354 = vmatpush1.msra.mxu0 0.0
        %1355 = vmatprep.subr.mxu0 0.0
        %1356 = vmatpush1.msra.mxu0 0.0
        %1357 = vmatprep.mubr.f32.mxu0 0.0
        %1358 = vmatmul.mubr.f32.gmra.mrb[0].mxu0 %v1291
        %v1359 = vpop.f32.mrb[0].mxu0
        %v1360 = vadd.f32 0.0, %v1359
        %v1361 = vpop.f32.mrb[0].mxu0
        %v1362 = vadd.f32 0.0, %v1361
        %1363 = vdwg.mxu0
        %v1364 = vadd.f32 %v1211, %v1360
        %v1365 = vadd.f32 %v1212, %v1362
        %v1366 = vld [vmem:[%s601] sm:$0xff]
        %v1367 = vld [vmem:[%s601 + $0x8] sm:$0xff]
        %s1368 = sld [smem:[#allocation19 + $0x18]]
        %v1369 = vstv %s1368
        %v1370 = vmul.f32 %v1369, %v1366
        %s1371 = sld [smem:[#allocation19 + $0x19]]
        %v1372 = vstv %s1371
        %v1373 = vmul.f32 %v1372, %v1366
        %s1374 = sld [smem:[#allocation19 + $0x1a]]
        %v1375 = vstv %s1374
        %v1376 = vmul.f32 %v1375, %v1366
        %s1377 = sld [smem:[#allocation19 + $0x1b]]
        %v1378 = vstv %s1377
        %v1379 = vmul.f32 %v1378, %v1366
        %s1380 = sld [smem:[#allocation19 + $0x1c]]
        %v1381 = vstv %s1380
        %v1382 = vmul.f32 %v1381, %v1366
        %v1384 = vrot.slane %v1382, 4
        %v1386 = vadd.f32 %v1370, %v1384
        %s1387 = sld [smem:[#allocation19 + $0x1d]]
        %v1388 = vstv %s1387
        %v1389 = vmul.f32 %v1388, %v1366
        %v1391 = vrot.slane %v1389, 4
        %v1393 = vadd.f32 %v1373, %v1391
        %s1394 = sld [smem:[#allocation19 + $0x1e]]
        %v1395 = vstv %s1394
        %v1396 = vmul.f32 %v1395, %v1366
        %v1398 = vrot.slane %v1396, 4
        %v1400 = vadd.f32 %v1376, %v1398
        %s1401 = sld [smem:[#allocation19 + $0x1f]]
        %v1402 = vstv %s1401
        %v1403 = vmul.f32 %v1402, %v1366
        %v1405 = vrot.slane %v1403, 4
        %v1407 = vadd.f32 %v1379, %v1405
        %s1408 = sld [smem:[#allocation19 + $0x20]]
        %v1409 = vstv %s1408
        %v1410 = vmul.f32 %v1409, %v1367
        %v1411 = vadd.f32 %v1386, %v1410
        %s1412 = sld [smem:[#allocation19 + $0x21]]
        %v1413 = vstv %s1412
        %v1414 = vmul.f32 %v1413, %v1367
        %v1415 = vadd.f32 %v1393, %v1414
        %s1416 = sld [smem:[#allocation19 + $0x22]]
        %v1417 = vstv %s1416
        %v1418 = vmul.f32 %v1417, %v1367
        %v1419 = vadd.f32 %v1400, %v1418
        %s1420 = sld [smem:[#allocation19 + $0x23]]
        %v1421 = vstv %s1420
        %v1422 = vmul.f32 %v1421, %v1367
        %v1423 = vadd.f32 %v1407, %v1422
        %s1424 = sld [smem:[#allocation19 + $0x24]]
        %v1425 = vstv %s1424
        %v1426 = vmul.f32 %v1425, %v1367
        %v1428 = vrot.slane %v1426, 4
        %v1430 = vadd.f32 %v1411, %v1428
        %s1431 = sld [smem:[#allocation19 + $0x25]]
        %v1432 = vstv %s1431
        %v1433 = vmul.f32 %v1432, %v1367
        %v1435 = vrot.slane %v1433, 4
        %v1437 = vadd.f32 %v1415, %v1435
        %s1438 = sld [smem:[#allocation19 + $0x26]]
        %v1439 = vstv %s1438
        %v1440 = vmul.f32 %v1439, %v1367
        %v1442 = vrot.slane %v1440, 4
        %v1444 = vadd.f32 %v1419, %v1442
        %s1445 = sld [smem:[#allocation19 + $0x27]]
        %v1446 = vstv %s1445
        %v1447 = vmul.f32 %v1446, %v1367
        %v1449 = vrot.slane %v1447, 4
        %v1451 = vadd.f32 %v1423, %v1449
        %v1453 = vrot.slane %v1437, 1
        %v1455 = vadd.f32 %v1430, %v1453
        %v1457 = vrot.slane %v1444, 2
        %v1459 = vadd.f32 %v1455, %v1457
        %v1461 = vrot.slane %v1451, 3
        %v1463 = vadd.f32 %v1459, %v1461
        %s1464 = sld [smem:[#allocation20 + $0x4]]
        %v1465 = vstv %s1464
        %v1466 = vadd.f32 %v1463, %v1465
        %v1467 = vsub.f32 0.0, %v1466
        %v1468 = vmul.f32 %v1467, 1.442695
        %v1469 = vpow.pop %v1468
        %v1470 = vadd.f32 %v1469, 1.0
        %v1471 = vrcp.pop %v1470
        %v1472 = vld [vmem:[%s9] sm:$0xff]
        %v1473 = vld [vmem:[%s9 + $0x8] sm:$0xff]
        %v1474 = vld [vmem:[%s9 + $0x10] sm:$0xff]
        %v1475 = vld [vmem:[%s9 + $0x18] sm:$0xff]
        %vm1476 = vcmask 130048
        %v1478 = vsel %vm1476, %v1471, 0
        %1480 = vmatprep.subr.mxu0 %v1473
        %1481 = vmatpush1.msra.mxu0 %v1472
        %1482 = vmatprep.subr.mxu0 %v1475
        %1483 = vmatpush1.msra.mxu0 %v1474
        %1484 = vmatprep.subr.mxu0 0.0
        %1485 = vmatpush1.msra.mxu0 0.0
        %1486 = vmatprep.subr.mxu0 0.0
        %1487 = vmatpush1.msra.mxu0 0.0
        %1488 = vmatprep.subr.mxu0 0.0
        %1489 = vmatpush1.msra.mxu0 0.0
        %1490 = vmatprep.subr.mxu0 0.0
        %1491 = vmatpush1.msra.mxu0 0.0
        %1492 = vmatprep.subr.mxu0 0.0
        %1493 = vmatpush1.msra.mxu0 0.0
        %1494 = vmatprep.subr.mxu0 0.0
        %1495 = vmatpush1.msra.mxu0 0.0
        %1496 = vmatprep.subr.mxu0 0.0
        %1497 = vmatpush1.msra.mxu0 0.0
        %1498 = vmatprep.subr.mxu0 0.0
        %1499 = vmatpush1.msra.mxu0 0.0
        %1500 = vmatprep.subr.mxu0 0.0
        %1501 = vmatpush1.msra.mxu0 0.0
        %1502 = vmatprep.subr.mxu0 0.0
        %1503 = vmatpush1.msra.mxu0 0.0
        %1504 = vmatprep.subr.mxu0 0.0
        %1505 = vmatpush1.msra.mxu0 0.0
        %1506 = vmatprep.subr.mxu0 0.0
        %1507 = vmatpush1.msra.mxu0 0.0
        %1508 = vmatprep.subr.mxu0 0.0
        %1509 = vmatpush1.msra.mxu0 0.0
        %1510 = vmatprep.subr.mxu0 0.0
        %1511 = vmatpush1.msra.mxu0 0.0
        %1512 = vmatprep.subr.mxu0 0.0
        %1513 = vmatpush1.msra.mxu0 0.0
        %1514 = vmatprep.subr.mxu0 0.0
        %1515 = vmatpush1.msra.mxu0 0.0
        %1516 = vmatprep.subr.mxu0 0.0
        %1517 = vmatpush1.msra.mxu0 0.0
        %1518 = vmatprep.subr.mxu0 0.0
        %1519 = vmatpush1.msra.mxu0 0.0
        %1520 = vmatprep.subr.mxu0 0.0
        %1521 = vmatpush1.msra.mxu0 0.0
        %1522 = vmatprep.subr.mxu0 0.0
        %1523 = vmatpush1.msra.mxu0 0.0
        %1524 = vmatprep.subr.mxu0 0.0
        %1525 = vmatpush1.msra.mxu0 0.0
        %1526 = vmatprep.subr.mxu0 0.0
        %1527 = vmatpush1.msra.mxu0 0.0
        %1528 = vmatprep.subr.mxu0 0.0
        %1529 = vmatpush1.msra.mxu0 0.0
        %1530 = vmatprep.subr.mxu0 0.0
        %1531 = vmatpush1.msra.mxu0 0.0
        %1532 = vmatprep.subr.mxu0 0.0
        %1533 = vmatpush1.msra.mxu0 0.0
        %1534 = vmatprep.subr.mxu0 0.0
        %1535 = vmatpush1.msra.mxu0 0.0
        %1536 = vmatprep.subr.mxu0 0.0
        %1537 = vmatpush1.msra.mxu0 0.0
        %1538 = vmatprep.subr.mxu0 0.0
        %1539 = vmatpush1.msra.mxu0 0.0
        %1540 = vmatprep.subr.mxu0 0.0
        %1541 = vmatpush1.msra.mxu0 0.0
        %1542 = vmatprep.subr.mxu0 0.0
        %1543 = vmatpush1.msra.mxu0 0.0
        %1544 = vmatprep.mubr.f32.mxu0 0.0
        %1545 = vmatmul.mubr.f32.gmra.mrb[0].mxu0 %v1478
        %v1546 = vpop.f32.mrb[0].mxu0
        %v1547 = vadd.f32 0.0, %v1546
        %v1548 = vpop.f32.mrb[0].mxu0
        %v1549 = vadd.f32 0.0, %v1548
        %1550 = vdwg.mxu0
        %v1551 = vadd.f32 %v1364, %v1547
        %v1552 = vadd.f32 %v1365, %v1549
        %v1553 = vsub.f32 0.0, %v1551
        %v1554 = vsub.f32 0.0, %v1552
        %v1555 = vmul.f32 %v1553, 1.442695
        %v1556 = vpow.pop %v1555
        %v1557 = vmul.f32 %v1554, 1.442695
        %v1558 = vpow.pop %v1557
        %v1559 = vadd.f32 %v1556, 1.0
        %v1560 = vadd.f32 %v1558, 1.0
        %v1561 = vrcp.pop %v1559
        %v1562 = vrcp.pop %v1560
        %v1565 = vcombine.low %v1561, %v1562
        %v1567 = vunpack.c.l.s4 1966171168
        %v1568 = vunpack.c.0.s8 %v1567
        %v1569 = vlaneseq
        %v1570 = vshrl.u32 %v1569, 7
        %v1571 = vsub.s32 %v1568, %v1570
        %v1572 = vrot.slane %v1565, %v1571
        %v1574 = vunpack.c.l.s4 1966171168
        %v1575 = vunpack.c.0.s8 %v1574
        %v1576 = vlaneseq
        %v1577 = vshrl.u32 %v1576, 7
        %v1578 = vsub.s32 %v1575, %v1577
        %v1579 = vrot.slane %v1572, %v1578
        %v1581 = vlaneseq
        %vm1582 = vcmp.ge.s32.totalorder %v1581, 0
        %vm1583 = vcmp.lt.s32.totalorder %v1581, 256
        %vm1584 = vmand %vm1582, %vm1583
        %1585 = vst.msk [vmem:[%s688] sm:$0x3] %vm1584, %v1579
        %s1586 = sand.u32 %s347, 1
        %s1587 = scalar_lea.sflag [#allocation5], %s1586
        %s1588 = sand.u32 %s347, 1
        %s1589 = smul.addr %s1588, 2
        %s1590 = scalar_lea.vmem [#allocation22], %s1589
        // Predicated region
        $region117: #{tpu_custom_call.1} parent=71 // pred_check
          %p1591 = pneg %p357
        $region118: #{tpu_custom_call.1} parent=71 // pred_check_branch
          %1593 = sbr.rel (%p1591) target = $region120
        $region119: #{tpu_custom_call.1} parent=71 // pred_region
          %s1595 = ssub.s32 32, 32
          %1596 = vsyncadd %s1587, %s1595
          %s1597 = smul.addr %s41, 2
          %s1598 = smul.addr %s1597, 16
          %s1599 = scalar_lea.hbm %s13, %s1598
          %s1601 = sshll.u32 %s1590, 4
          %s1602 = int_to_ptr.vmem [resolvable:$true] %s1601
          %1604 = dma.vmem_to_hbm [thread:$0]  %s1602, 32, %s1599, %s1587
        $region120: #{tpu_custom_call.1} parent=71 // pred_fallthru
          _
      $region72: #{tpu_custom_call.1} parent=5 // pred_fallthru
        _
      %p1605 = scmp.le.s32.totalorder 2, %s36
      // Predicated region
      $region121: #{tpu_custom_call.1} parent=5 // pred_check
        %p1606 = pneg %p1605
      $region122: #{tpu_custom_call.1} parent=5 // pred_check_branch
        %1608 = sbr.rel (%p1606) target = $region124
      $region123: #{tpu_custom_call.1} parent=5 // pred_region
        %s1609 = ssub.s32 %s36, 2
        // Predicated region
        $region125: #{tpu_custom_call.1} parent=123 // pred_check
          %p1610 = pneg %p363
        $region126: #{tpu_custom_call.1} parent=123 // pred_check_branch
          %1612 = sbr.rel (%p1610) target = $region128
        $region127: #{tpu_custom_call.1} parent=123 // pred_region
          %s1613 = sand.u32 %s348, 1
          %s1614 = scalar_lea.sflag [#allocation5], %s1613
          %s1615 = sand.u32 %s348, 1
          %s1616 = smul.addr %s1615, 2
          %s1617 = scalar_lea.vmem [#allocation22], %s1616
          %1618 = dma.done %s1614, 32
        $region128: #{tpu_custom_call.1} parent=123 // pred_fallthru
          _
      $region124: #{tpu_custom_call.1} parent=5 // pred_fallthru
        _
    $region6: #{tpu_custom_call.1} parent=1 // loop_footer
      %s40 = sadd.s32 1, %s36
    $region7: #{tpu_custom_call.1} parent=1 // loop_footer_branch
      %35 = sbr.rel target = $region3
    $region8: #{tpu_custom_call.1} parent=1 // loop_exit
      _
    %1619 = vsyncpa [#allocation4], 1
    %s1620 = scalar_lea.sflag [#allocation4], 1
    %1621 = vsyncpa %s1620, 1
    %1622 = vsyncpa [#allocation8], 1
    %s1623 = scalar_lea.sflag [#allocation8], 1
    %1624 = vsyncpa %s1623, 1
    %1625 = vsyncpa [#allocation11], 1
    %s1626 = scalar_lea.sflag [#allocation11], 1
    %1627 = vsyncpa %s1626, 1
    %1628 = vsyncpa [#allocation14], 1
    %1629 = vsyncpa [#allocation17], 1
    %1630 = vsyncpa [#allocation5], 1
    %s1631 = scalar_lea.sflag [#allocation5], 1
    %1632 = vsyncpa %s1631, 1
    %1633 = vsyncpa [#allocation6], 1
    %s1634 = scalar_lea.sflag [#allocation6], 1
    %1635 = vsyncpa %s1634, 1
    %1636 = vsyncpa [#allocation21], 1

</llo_original>
